<compile_context>
chip_gen: v7x
topology: tpu7x:2x2x1
jax: 0.10.0
libtpu: 0.0.40
codegen_flags: <defaults>
</compile_context>

<pallas_src>
import jax
import jax.numpy as jnp
from jax.experimental import pallas as pl
from jax.experimental.pallas import tpu as pltpu


def _lstm_kernel(x_ref,          # (T, TB, E)   f32, time-major batch block
                 w0x_ref,        # (E, 4H)      layer-0 input weights  (gates i,f,o,g)
                 w0h_ref,        # (H, 4H)      layer-0 recurrent weights
                 b0_ref,         # (1, 4H)      layer-0 combined bias
                 w1_ref,         # (2H, 4H)     layer-1 packed [W_ih1; W_hh1]
                 b1_ref,         # (1, 4H)
                 wfc_ref,        # (H, 128)     fc, zero-padded 64 -> 128 lanes
                 bfc_ref,        # (1, 128)
                 wout_ref,       # (128, 128)   out, zero-padded (64, C) -> (128, 128)
                 bout_ref,       # (1, 128)
                 out_ref):       # (TB, 128)    lane-dense logits block
    T, TB, E = x_ref.shape
    H = w0h_ref.shape[0]
    H3 = 3 * H
    H4 = 4 * H

    # Hoisted layer-0 input projection: one big MXU matmul + bias, outside the loop.
    x_all = x_ref[...].reshape(T * TB, E)
    zx0 = (jnp.dot(x_all, w0x_ref[...], preferred_element_type=jnp.float32)
           + b0_ref[...])                                    # (T*TB, 4H)

    w0h = w0h_ref[...]
    w1 = w1_ref[...]
    b1b = jnp.broadcast_to(b1_ref[...], (TB, H4))            # hoisted broadcast

    def gates(z, c):
        # Packed gate order i, f, o, g: one sigmoid over 3H lanes, one tanh over H.
        s = jax.nn.sigmoid(z[:, :H3])
        g = jnp.tanh(z[:, H3:])
        i_g = s[:, 0:H]
        f_g = s[:, H:2 * H]
        o_g = s[:, 2 * H:H3]
        c_new = f_g * c + i_g * g
        h_new = o_g * jnp.tanh(c_new)
        return h_new, c_new

    zeros = jnp.zeros((TB, H), jnp.float32)
    h0, c0, h1, c1 = zeros, zeros, zeros, zeros

    # T is static: fully unrolled time loop (gives the LLO scheduler visibility).
    for t in range(T):
        z0 = zx0[t * TB:(t + 1) * TB, :] + jnp.dot(
            h0, w0h, preferred_element_type=jnp.float32)
        h0, c0 = gates(z0, c0)
        # inter-layer dropout (p=0.3) is identity in eval mode
        z1 = jnp.dot(jnp.concatenate([h0, h1], axis=1), w1,
                     preferred_element_type=jnp.float32) + b1b
        h1, c1 = gates(z1, c1)

    # Head: fc -> relu -> dropout(eval = identity) -> out   (lane-dense, zero-padded).
    y = jnp.maximum(
        jnp.dot(h1, wfc_ref[...], preferred_element_type=jnp.float32) + bfc_ref[...],
        0.0)
    out_ref[...] = (jnp.dot(y, wout_ref[...], preferred_element_type=jnp.float32)
                    + bout_ref[...])


def _permute_gates(w, H):
    """Reorder gate blocks along the last axis: (i,f,g,o) -> (i,f,o,g)."""
    return jnp.concatenate(
        [w[:, 0:H], w[:, H:2 * H], w[:, 3 * H:4 * H], w[:, 2 * H:3 * H]], axis=1)


def _round_up(n, m):
    return -(-n // m) * m


def lstm_model_forward(token_ids, params):
    """token_ids: (B, T) int32. Returns (B, num_classes) f32 logits (eval mode)."""
    B, T = token_ids.shape
    E = params["embedding"].shape[1]
    H = params["w_hh0"].shape[0]
    FC = params["w_fc"].shape[1]
    C = params["w_out"].shape[1]
    LANE = 128

    # Embedding lookup (frozen pretrained table) = gather; plain-JAX glue.
    x = jnp.take(params["embedding"], token_ids, axis=0).astype(jnp.float32)  # (B,T,E)
    x = jnp.transpose(x, (1, 0, 2))                                           # (T,B,E)

    # Pad batch to a sublane-friendly size (>=8); large batches tile in 128-row blocks.
    B_pad = max(8, _round_up(B, 8))
    TB = B_pad if B_pad <= 128 else 128
    B_pad = _round_up(B_pad, TB)
    x = jnp.pad(x, ((0, 0), (0, B_pad - B), (0, 0)))

    # Gate reorder (i,f,g,o) -> (i,f,o,g); layer-1 weights packed [W_ih; W_hh].
    # Weights kept f32: at these sizes the MXU is latency-bound, not bandwidth-bound.
    w0x = _permute_gates(params["w_ih0"], H)
    w0h = _permute_gates(params["w_hh0"], H)
    b0 = _permute_gates(params["b0"], H)
    w1 = jnp.concatenate([_permute_gates(params["w_ih1"], H),
                          _permute_gates(params["w_hh1"], H)], axis=0)   # (2H, 4H)
    b1 = _permute_gates(params["b1"], H)

    # Lane-dense head: zero-pad fc (64) and num_classes (C) up to 128 lanes.
    FC_pad = _round_up(FC, LANE)
    C_pad = _round_up(C, LANE)
    wfc = jnp.zeros((H, FC_pad), jnp.float32).at[:, :FC].set(params["w_fc"])
    bfc = jnp.zeros((1, FC_pad), jnp.float32).at[:, :FC].set(params["b_fc"])
    wout = jnp.zeros((FC_pad, C_pad), jnp.float32).at[:FC, :C].set(params["w_out"])
    bout = jnp.zeros((1, C_pad), jnp.float32).at[:, :C].set(params["b_out"])

    weights = (w0x, w0h, b0, w1, b1, wfc, bfc, wout, bout)
    w_specs = [pl.BlockSpec(w.shape, lambda b: (0, 0)) for w in weights]

    out = pl.pallas_call(
        _lstm_kernel,
        out_shape=jax.ShapeDtypeStruct((B_pad, C_pad), jnp.float32),
        grid_spec=pltpu.PrefetchScalarGridSpec(
            num_scalar_prefetch=0,
            grid=(B_pad // TB,),
            in_specs=[pl.BlockSpec((T, TB, E), lambda b: (0, b, 0))] + w_specs,
            out_specs=pl.BlockSpec((TB, C_pad), lambda b: (b, 0)),
        ),
        compiler_params=pltpu.CompilerParams(
            dimension_semantics=("parallel",)),
    )(x, *weights)
    return out[:B, :C]


def _reference_forward(token_ids, params):
    """Pure-JAX reference matching torch semantics (eval mode), original gate order."""
    x = jnp.take(params["embedding"], token_ids, axis=0)  # (B, T, E)
    B, T, _ = x.shape
    H = params["w_hh0"].shape[0]

    def cell(x_t, h, c, wih, whh, b):
        z = x_t @ wih + h @ whh + b
        i = jax.nn.sigmoid(z[:, 0:H])
        f = jax.nn.sigmoid(z[:, H:2 * H])
        g = jnp.tanh(z[:, 2 * H:3 * H])
        o = jax.nn.sigmoid(z[:, 3 * H:4 * H])
        c = f * c + i * g
        return o * jnp.tanh(c), c

    h0 = c0 = h1 = c1 = jnp.zeros((B, H), jnp.float32)
    for t in range(T):
        h0, c0 = cell(x[:, t, :], h0, c0, params["w_ih0"], params["w_hh0"], params["b0"])
        h1, c1 = cell(h0, h1, c1, params["w_ih1"], params["w_hh1"], params["b1"])
    y = jnp.maximum(h1 @ params["w_fc"] + params["b_fc"], 0.0)
    return y @ params["w_out"] + params["b_out"]


def make_params(key, vocab_size, embed_dim, hidden_dim, num_classes):
    ks = jax.random.split(key, 12)

    def u(k, shape, scale=0.1):
        return jax.random.uniform(k, shape, jnp.float32, -1.0, 1.0) * scale

    H4 = 4 * hidden_dim
    return {
        "embedding": u(ks[0], (vocab_size, embed_dim), 1.0),   # frozen pretrained table
        # layer 0  (weights stored transposed: (in, 4H), PyTorch gate order i,f,g,o)
        "w_ih0": u(ks[1], (embed_dim, H4)),
        "w_hh0": u(ks[2], (hidden_dim, H4)),
        "b0":    u(ks[3], (1, H4)),          # b_ih + b_hh combined
        # layer 1
        "w_ih1": u(ks[4], (hidden_dim, H4)),
        "w_hh1": u(ks[5], (hidden_dim, H4)),
        "b1":    u(ks[6], (1, H4)),
        # head
        "w_fc":  u(ks[7], (hidden_dim, 64)),
        "b_fc":  u(ks[8], (1, 64)),
        "w_out": u(ks[9], (64, num_classes)),
        "b_out": u(ks[10], (1, num_classes)),
    }


if __name__ == "__main__":
    VOCAB, EMBED, HIDDEN, CLASSES = 32, 16, 32, 4
    B, T = 2, 8

    key = jax.random.PRNGKey(0)
    pkey, dkey = jax.random.split(key)
    params = make_params(pkey, VOCAB, EMBED, HIDDEN, CLASSES)
    token_ids = jax.random.randint(dkey, (B, T), 0, VOCAB, dtype=jnp.int32)

    out = jax.block_until_ready(jax.jit(lstm_model_forward)(token_ids, params))

    ref = _reference_forward(token_ids, params)
    assert out.shape == (B, CLASSES)
    assert jnp.allclose(out, ref, atol=1e-4, rtol=1e-4), "Pallas output mismatch vs reference"

    # dropout layers are identity at inference (eval mode); no Pallas op needed.
    print("KERNEL_OK")
</pallas_src>

<mosaic_0001>
module attributes {stable_mosaic.version = 11 : i64} {
  func.func @_lstm_kernel(%arg0: i32, %arg1: memref<8x8x16xf32, #tpu.memory_space<vmem>>, %arg2: memref<16x128xf32, #tpu.memory_space<vmem>>, %arg3: memref<32x128xf32, #tpu.memory_space<vmem>>, %arg4: memref<1x128xf32, #tpu.memory_space<vmem>>, %arg5: memref<64x128xf32, #tpu.memory_space<vmem>>, %arg6: memref<1x128xf32, #tpu.memory_space<vmem>>, %arg7: memref<32x128xf32, #tpu.memory_space<vmem>>, %arg8: memref<1x128xf32, #tpu.memory_space<vmem>>, %arg9: memref<128x128xf32, #tpu.memory_space<vmem>>, %arg10: memref<1x128xf32, #tpu.memory_space<vmem>>, %arg11: memref<8x128xf32, #tpu.memory_space<vmem>>) attributes {dimension_semantics = [#tpu.dimension_semantics<parallel>], iteration_bounds = array<i64: 1>, scalar_prefetch = 0 : i64, scratch_operands = 0 : i64, tpu.core_type = #tpu.core_type<tc>, window_params = [{transform_indices = @transform_0, window_bounds = array<i64: 8, 8, 16>}, {pipeline_mode = #tpu.pipeline_mode<synchronous>, transform_indices = @transform_1, window_bounds = array<i64: 16, 128>}, {pipeline_mode = #tpu.pipeline_mode<synchronous>, transform_indices = @transform_2, window_bounds = array<i64: 32, 128>}, {pipeline_mode = #tpu.pipeline_mode<synchronous>, transform_indices = @transform_3, window_bounds = array<i64: 1, 128>}, {pipeline_mode = #tpu.pipeline_mode<synchronous>, transform_indices = @transform_4, window_bounds = array<i64: 64, 128>}, {pipeline_mode = #tpu.pipeline_mode<synchronous>, transform_indices = @transform_5, window_bounds = array<i64: 1, 128>}, {pipeline_mode = #tpu.pipeline_mode<synchronous>, transform_indices = @transform_6, window_bounds = array<i64: 32, 128>}, {pipeline_mode = #tpu.pipeline_mode<synchronous>, transform_indices = @transform_7, window_bounds = array<i64: 1, 128>}, {pipeline_mode = #tpu.pipeline_mode<synchronous>, transform_indices = @transform_8, window_bounds = array<i64: 128, 128>}, {pipeline_mode = #tpu.pipeline_mode<synchronous>, transform_indices = @transform_9, window_bounds = array<i64: 1, 128>}, {transform_indices = @transform_10, window_bounds = array<i64: 8, 128>}]} {
    %c0 = arith.constant 0 : index
    %c0_0 = arith.constant 0 : index
    %c0_1 = arith.constant 0 : index
    %0 = vector.load %arg1[%c0, %c0_0, %c0_1] : memref<8x8x16xf32, #tpu.memory_space<vmem>>, vector<8x8x16xf32>
    %1 = vector.shape_cast %0 : vector<8x8x16xf32> to vector<64x16xf32>
    %c0_2 = arith.constant 0 : index
    %c0_3 = arith.constant 0 : index
    %2 = vector.load %arg2[%c0_2, %c0_3] : memref<16x128xf32, #tpu.memory_space<vmem>>, vector<16x128xf32>
    %cst = arith.constant dense<0.000000e+00> : vector<64x128xf32>
    %3 = tpu.matmul %1, %2, %cst {dimension_numbers = #tpu.dot_dimension_numbers<[1], [0], [0], [1], [0, 0, 1, 1], [], []>} : vector<64x16xf32>, vector<16x128xf32>, vector<64x128xf32> -> vector<64x128xf32>
    %c0_4 = arith.constant 0 : index
    %c0_5 = arith.constant 0 : index
    %4 = vector.load %arg4[%c0_4, %c0_5] : memref<1x128xf32, #tpu.memory_space<vmem>>, vector<1x128xf32>
    %5 = vector.broadcast %4 : vector<1x128xf32> to vector<64x128xf32>
    %6 = arith.addf %3, %5 : vector<64x128xf32>
    %c0_6 = arith.constant 0 : index
    %c0_7 = arith.constant 0 : index
    %7 = vector.load %arg3[%c0_6, %c0_7] : memref<32x128xf32, #tpu.memory_space<vmem>>, vector<32x128xf32>
    %c0_8 = arith.constant 0 : index
    %c0_9 = arith.constant 0 : index
    %8 = vector.load %arg5[%c0_8, %c0_9] : memref<64x128xf32, #tpu.memory_space<vmem>>, vector<64x128xf32>
    %c0_10 = arith.constant 0 : index
    %c0_11 = arith.constant 0 : index
    %9 = vector.load %arg6[%c0_10, %c0_11] : memref<1x128xf32, #tpu.memory_space<vmem>>, vector<1x128xf32>
    %10 = vector.shape_cast %9 : vector<1x128xf32> to vector<1x128xf32>
    %11 = vector.broadcast %10 : vector<1x128xf32> to vector<8x128xf32>
    %cst_12 = arith.constant 0.000000e+00 : f32
    %12 = vector.broadcast %cst_12 : f32 to vector<8x32xf32>
    %13 = vector.extract_strided_slice %6 {offsets = [0, 0], sizes = [8, 128], strides = [1, 1]} : vector<64x128xf32> to vector<8x128xf32>
    %cst_13 = arith.constant dense<0.000000e+00> : vector<8x128xf32>
    %14 = tpu.matmul %12, %7, %cst_13 {dimension_numbers = #tpu.dot_dimension_numbers<[1], [0], [0], [1], [0, 0, 1, 1], [], []>} : vector<8x32xf32>, vector<32x128xf32>, vector<8x128xf32> -> vector<8x128xf32>
    %15 = arith.addf %13, %14 : vector<8x128xf32>
    %16 = vector.extract_strided_slice %15 {offsets = [0, 0], sizes = [8, 96], strides = [1, 1]} : vector<8x128xf32> to vector<8x96xf32>
    %17 = arith.negf %16 : vector<8x96xf32>
    %18 = math.exp %17 : vector<8x96xf32>
    %cst_14 = arith.constant 1.000000e+00 : f32
    %19 = vector.broadcast %cst_14 : f32 to vector<8x96xf32>
    %20 = arith.addf %19, %18 : vector<8x96xf32>
    %21 = arith.divf %19, %20 : vector<8x96xf32>
    %22 = vector.extract_strided_slice %15 {offsets = [0, 96], sizes = [8, 32], strides = [1, 1]} : vector<8x128xf32> to vector<8x32xf32>
    %23 = math.tanh %22 : vector<8x32xf32>
    %24 = vector.extract_strided_slice %21 {offsets = [0, 0], sizes = [8, 32], strides = [1, 1]} : vector<8x96xf32> to vector<8x32xf32>
    %25 = vector.extract_strided_slice %21 {offsets = [0, 32], sizes = [8, 32], strides = [1, 1]} : vector<8x96xf32> to vector<8x32xf32>
    %26 = vector.extract_strided_slice %21 {offsets = [0, 64], sizes = [8, 32], strides = [1, 1]} : vector<8x96xf32> to vector<8x32xf32>
    %27 = arith.mulf %25, %12 : vector<8x32xf32>
    %28 = arith.mulf %24, %23 : vector<8x32xf32>
    %29 = arith.addf %27, %28 : vector<8x32xf32>
    %30 = math.tanh %29 : vector<8x32xf32>
    %31 = arith.mulf %26, %30 : vector<8x32xf32>
    %32 = tpu.concatenate %31, %12 in 1 : vector<8x32xf32>, vector<8x32xf32> -> vector<8x64xf32>
    %cst_15 = arith.constant dense<0.000000e+00> : vector<8x128xf32>
    %33 = tpu.matmul %32, %8, %cst_15 {dimension_numbers = #tpu.dot_dimension_numbers<[1], [0], [0], [1], [0, 0, 1, 1], [], []>} : vector<8x64xf32>, vector<64x128xf32>, vector<8x128xf32> -> vector<8x128xf32>
    %34 = arith.addf %33, %11 : vector<8x128xf32>
    %35 = vector.extract_strided_slice %34 {offsets = [0, 0], sizes = [8, 96], strides = [1, 1]} : vector<8x128xf32> to vector<8x96xf32>
    %36 = arith.negf %35 : vector<8x96xf32>
    %37 = math.exp %36 : vector<8x96xf32>
    %cst_16 = arith.constant 1.000000e+00 : f32
    %38 = vector.broadcast %cst_16 : f32 to vector<8x96xf32>
    %39 = arith.addf %38, %37 : vector<8x96xf32>
    %40 = arith.divf %38, %39 : vector<8x96xf32>
    %41 = vector.extract_strided_slice %34 {offsets = [0, 96], sizes = [8, 32], strides = [1, 1]} : vector<8x128xf32> to vector<8x32xf32>
    %42 = math.tanh %41 : vector<8x32xf32>
    %43 = vector.extract_strided_slice %40 {offsets = [0, 0], sizes = [8, 32], strides = [1, 1]} : vector<8x96xf32> to vector<8x32xf32>
    %44 = vector.extract_strided_slice %40 {offsets = [0, 32], sizes = [8, 32], strides = [1, 1]} : vector<8x96xf32> to vector<8x32xf32>
    %45 = vector.extract_strided_slice %40 {offsets = [0, 64], sizes = [8, 32], strides = [1, 1]} : vector<8x96xf32> to vector<8x32xf32>
    %46 = arith.mulf %44, %12 : vector<8x32xf32>
    %47 = arith.mulf %43, %42 : vector<8x32xf32>
    %48 = arith.addf %46, %47 : vector<8x32xf32>
    %49 = math.tanh %48 : vector<8x32xf32>
    %50 = arith.mulf %45, %49 : vector<8x32xf32>
    %51 = vector.extract_strided_slice %6 {offsets = [8, 0], sizes = [8, 128], strides = [1, 1]} : vector<64x128xf32> to vector<8x128xf32>
    %cst_17 = arith.constant dense<0.000000e+00> : vector<8x128xf32>
    %52 = tpu.matmul %31, %7, %cst_17 {dimension_numbers = #tpu.dot_dimension_numbers<[1], [0], [0], [1], [0, 0, 1, 1], [], []>} : vector<8x32xf32>, vector<32x128xf32>, vector<8x128xf32> -> vector<8x128xf32>
    %53 = arith.addf %51, %52 : vector<8x128xf32>
    %54 = vector.extract_strided_slice %53 {offsets = [0, 0], sizes = [8, 96], strides = [1, 1]} : vector<8x128xf32> to vector<8x96xf32>
    %55 = arith.negf %54 : vector<8x96xf32>
    %56 = math.exp %55 : vector<8x96xf32>
    %cst_18 = arith.constant 1.000000e+00 : f32
    %57 = vector.broadcast %cst_18 : f32 to vector<8x96xf32>
    %58 = arith.addf %57, %56 : vector<8x96xf32>
    %59 = arith.divf %57, %58 : vector<8x96xf32>
    %60 = vector.extract_strided_slice %53 {offsets = [0, 96], sizes = [8, 32], strides = [1, 1]} : vector<8x128xf32> to vector<8x32xf32>
    %61 = math.tanh %60 : vector<8x32xf32>
    %62 = vector.extract_strided_slice %59 {offsets = [0, 0], sizes = [8, 32], strides = [1, 1]} : vector<8x96xf32> to vector<8x32xf32>
    %63 = vector.extract_strided_slice %59 {offsets = [0, 32], sizes = [8, 32], strides = [1, 1]} : vector<8x96xf32> to vector<8x32xf32>
    %64 = vector.extract_strided_slice %59 {offsets = [0, 64], sizes = [8, 32], strides = [1, 1]} : vector<8x96xf32> to vector<8x32xf32>
    %65 = arith.mulf %63, %29 : vector<8x32xf32>
    %66 = arith.mulf %62, %61 : vector<8x32xf32>
    %67 = arith.addf %65, %66 : vector<8x32xf32>
    %68 = math.tanh %67 : vector<8x32xf32>
    %69 = arith.mulf %64, %68 : vector<8x32xf32>
    %70 = tpu.concatenate %69, %50 in 1 : vector<8x32xf32>, vector<8x32xf32> -> vector<8x64xf32>
    %cst_19 = arith.constant dense<0.000000e+00> : vector<8x128xf32>
    %71 = tpu.matmul %70, %8, %cst_19 {dimension_numbers = #tpu.dot_dimension_numbers<[1], [0], [0], [1], [0, 0, 1, 1], [], []>} : vector<8x64xf32>, vector<64x128xf32>, vector<8x128xf32> -> vector<8x128xf32>
    %72 = arith.addf %71, %11 : vector<8x128xf32>
    %73 = vector.extract_strided_slice %72 {offsets = [0, 0], sizes = [8, 96], strides = [1, 1]} : vector<8x128xf32> to vector<8x96xf32>
    %74 = arith.negf %73 : vector<8x96xf32>
    %75 = math.exp %74 : vector<8x96xf32>
    %cst_20 = arith.constant 1.000000e+00 : f32
    %76 = vector.broadcast %cst_20 : f32 to vector<8x96xf32>
    %77 = arith.addf %76, %75 : vector<8x96xf32>
    %78 = arith.divf %76, %77 : vector<8x96xf32>
    %79 = vector.extract_strided_slice %72 {offsets = [0, 96], sizes = [8, 32], strides = [1, 1]} : vector<8x128xf32> to vector<8x32xf32>
    %80 = math.tanh %79 : vector<8x32xf32>
    %81 = vector.extract_strided_slice %78 {offsets = [0, 0], sizes = [8, 32], strides = [1, 1]} : vector<8x96xf32> to vector<8x32xf32>
    %82 = vector.extract_strided_slice %78 {offsets = [0, 32], sizes = [8, 32], strides = [1, 1]} : vector<8x96xf32> to vector<8x32xf32>
    %83 = vector.extract_strided_slice %78 {offsets = [0, 64], sizes = [8, 32], strides = [1, 1]} : vector<8x96xf32> to vector<8x32xf32>
    %84 = arith.mulf %82, %48 : vector<8x32xf32>
    %85 = arith.mulf %81, %80 : vector<8x32xf32>
    %86 = arith.addf %84, %85 : vector<8x32xf32>
    %87 = math.tanh %86 : vector<8x32xf32>
    %88 = arith.mulf %83, %87 : vector<8x32xf32>
    %89 = vector.extract_strided_slice %6 {offsets = [16, 0], sizes = [8, 128], strides = [1, 1]} : vector<64x128xf32> to vector<8x128xf32>
    %cst_21 = arith.constant dense<0.000000e+00> : vector<8x128xf32>
    %90 = tpu.matmul %69, %7, %cst_21 {dimension_numbers = #tpu.dot_dimension_numbers<[1], [0], [0], [1], [0, 0, 1, 1], [], []>} : vector<8x32xf32>, vector<32x128xf32>, vector<8x128xf32> -> vector<8x128xf32>
    %91 = arith.addf %89, %90 : vector<8x128xf32>
    %92 = vector.extract_strided_slice %91 {offsets = [0, 0], sizes = [8, 96], strides = [1, 1]} : vector<8x128xf32> to vector<8x96xf32>
    %93 = arith.negf %92 : vector<8x96xf32>
    %94 = math.exp %93 : vector<8x96xf32>
    %cst_22 = arith.constant 1.000000e+00 : f32
    %95 = vector.broadcast %cst_22 : f32 to vector<8x96xf32>
    %96 = arith.addf %95, %94 : vector<8x96xf32>
    %97 = arith.divf %95, %96 : vector<8x96xf32>
    %98 = vector.extract_strided_slice %91 {offsets = [0, 96], sizes = [8, 32], strides = [1, 1]} : vector<8x128xf32> to vector<8x32xf32>
    %99 = math.tanh %98 : vector<8x32xf32>
    %100 = vector.extract_strided_slice %97 {offsets = [0, 0], sizes = [8, 32], strides = [1, 1]} : vector<8x96xf32> to vector<8x32xf32>
    %101 = vector.extract_strided_slice %97 {offsets = [0, 32], sizes = [8, 32], strides = [1, 1]} : vector<8x96xf32> to vector<8x32xf32>
    %102 = vector.extract_strided_slice %97 {offsets = [0, 64], sizes = [8, 32], strides = [1, 1]} : vector<8x96xf32> to vector<8x32xf32>
    %103 = arith.mulf %101, %67 : vector<8x32xf32>
    %104 = arith.mulf %100, %99 : vector<8x32xf32>
    %105 = arith.addf %103, %104 : vector<8x32xf32>
    %106 = math.tanh %105 : vector<8x32xf32>
    %107 = arith.mulf %102, %106 : vector<8x32xf32>
    %108 = tpu.concatenate %107, %88 in 1 : vector<8x32xf32>, vector<8x32xf32> -> vector<8x64xf32>
    %cst_23 = arith.constant dense<0.000000e+00> : vector<8x128xf32>
    %109 = tpu.matmul %108, %8, %cst_23 {dimension_numbers = #tpu.dot_dimension_numbers<[1], [0], [0], [1], [0, 0, 1, 1], [], []>} : vector<8x64xf32>, vector<64x128xf32>, vector<8x128xf32> -> vector<8x128xf32>
    %110 = arith.addf %109, %11 : vector<8x128xf32>
    %111 = vector.extract_strided_slice %110 {offsets = [0, 0], sizes = [8, 96], strides = [1, 1]} : vector<8x128xf32> to vector<8x96xf32>
    %112 = arith.negf %111 : vector<8x96xf32>
    %113 = math.exp %112 : vector<8x96xf32>
    %cst_24 = arith.constant 1.000000e+00 : f32
    %114 = vector.broadcast %cst_24 : f32 to vector<8x96xf32>
    %115 = arith.addf %114, %113 : vector<8x96xf32>
    %116 = arith.divf %114, %115 : vector<8x96xf32>
    %117 = vector.extract_strided_slice %110 {offsets = [0, 96], sizes = [8, 32], strides = [1, 1]} : vector<8x128xf32> to vector<8x32xf32>
    %118 = math.tanh %117 : vector<8x32xf32>
    %119 = vector.extract_strided_slice %116 {offsets = [0, 0], sizes = [8, 32], strides = [1, 1]} : vector<8x96xf32> to vector<8x32xf32>
    %120 = vector.extract_strided_slice %116 {offsets = [0, 32], sizes = [8, 32], strides = [1, 1]} : vector<8x96xf32> to vector<8x32xf32>
    %121 = vector.extract_strided_slice %116 {offsets = [0, 64], sizes = [8, 32], strides = [1, 1]} : vector<8x96xf32> to vector<8x32xf32>
    %122 = arith.mulf %120, %86 : vector<8x32xf32>
    %123 = arith.mulf %119, %118 : vector<8x32xf32>
    %124 = arith.addf %122, %123 : vector<8x32xf32>
    %125 = math.tanh %124 : vector<8x32xf32>
    %126 = arith.mulf %121, %125 : vector<8x32xf32>
    %127 = vector.extract_strided_slice %6 {offsets = [24, 0], sizes = [8, 128], strides = [1, 1]} : vector<64x128xf32> to vector<8x128xf32>
    %cst_25 = arith.constant dense<0.000000e+00> : vector<8x128xf32>
    %128 = tpu.matmul %107, %7, %cst_25 {dimension_numbers = #tpu.dot_dimension_numbers<[1], [0], [0], [1], [0, 0, 1, 1], [], []>} : vector<8x32xf32>, vector<32x128xf32>, vector<8x128xf32> -> vector<8x128xf32>
    %129 = arith.addf %127, %128 : vector<8x128xf32>
    %130 = vector.extract_strided_slice %129 {offsets = [0, 0], sizes = [8, 96], strides = [1, 1]} : vector<8x128xf32> to vector<8x96xf32>
    %131 = arith.negf %130 : vector<8x96xf32>
    %132 = math.exp %131 : vector<8x96xf32>
    %cst_26 = arith.constant 1.000000e+00 : f32
    %133 = vector.broadcast %cst_26 : f32 to vector<8x96xf32>
    %134 = arith.addf %133, %132 : vector<8x96xf32>
    %135 = arith.divf %133, %134 : vector<8x96xf32>
    %136 = vector.extract_strided_slice %129 {offsets = [0, 96], sizes = [8, 32], strides = [1, 1]} : vector<8x128xf32> to vector<8x32xf32>
    %137 = math.tanh %136 : vector<8x32xf32>
    %138 = vector.extract_strided_slice %135 {offsets = [0, 0], sizes = [8, 32], strides = [1, 1]} : vector<8x96xf32> to vector<8x32xf32>
    %139 = vector.extract_strided_slice %135 {offsets = [0, 32], sizes = [8, 32], strides = [1, 1]} : vector<8x96xf32> to vector<8x32xf32>
    %140 = vector.extract_strided_slice %135 {offsets = [0, 64], sizes = [8, 32], strides = [1, 1]} : vector<8x96xf32> to vector<8x32xf32>
    %141 = arith.mulf %139, %105 : vector<8x32xf32>
    %142 = arith.mulf %138, %137 : vector<8x32xf32>
    %143 = arith.addf %141, %142 : vector<8x32xf32>
    %144 = math.tanh %143 : vector<8x32xf32>
    %145 = arith.mulf %140, %144 : vector<8x32xf32>
    %146 = tpu.concatenate %145, %126 in 1 : vector<8x32xf32>, vector<8x32xf32> -> vector<8x64xf32>
    %cst_27 = arith.constant dense<0.000000e+00> : vector<8x128xf32>
    %147 = tpu.matmul %146, %8, %cst_27 {dimension_numbers = #tpu.dot_dimension_numbers<[1], [0], [0], [1], [0, 0, 1, 1], [], []>} : vector<8x64xf32>, vector<64x128xf32>, vector<8x128xf32> -> vector<8x128xf32>
    %148 = arith.addf %147, %11 : vector<8x128xf32>
    %149 = vector.extract_strided_slice %148 {offsets = [0, 0], sizes = [8, 96], strides = [1, 1]} : vector<8x128xf32> to vector<8x96xf32>
    %150 = arith.negf %149 : vector<8x96xf32>
    %151 = math.exp %150 : vector<8x96xf32>
    %cst_28 = arith.constant 1.000000e+00 : f32
    %152 = vector.broadcast %cst_28 : f32 to vector<8x96xf32>
    %153 = arith.addf %152, %151 : vector<8x96xf32>
    %154 = arith.divf %152, %153 : vector<8x96xf32>
    %155 = vector.extract_strided_slice %148 {offsets = [0, 96], sizes = [8, 32], strides = [1, 1]} : vector<8x128xf32> to vector<8x32xf32>
    %156 = math.tanh %155 : vector<8x32xf32>
    %157 = vector.extract_strided_slice %154 {offsets = [0, 0], sizes = [8, 32], strides = [1, 1]} : vector<8x96xf32> to vector<8x32xf32>
    %158 = vector.extract_strided_slice %154 {offsets = [0, 32], sizes = [8, 32], strides = [1, 1]} : vector<8x96xf32> to vector<8x32xf32>
    %159 = vector.extract_strided_slice %154 {offsets = [0, 64], sizes = [8, 32], strides = [1, 1]} : vector<8x96xf32> to vector<8x32xf32>
    %160 = arith.mulf %158, %124 : vector<8x32xf32>
    %161 = arith.mulf %157, %156 : vector<8x32xf32>
    %162 = arith.addf %160, %161 : vector<8x32xf32>
    %163 = math.tanh %162 : vector<8x32xf32>
    %164 = arith.mulf %159, %163 : vector<8x32xf32>
    %165 = vector.extract_strided_slice %6 {offsets = [32, 0], sizes = [8, 128], strides = [1, 1]} : vector<64x128xf32> to vector<8x128xf32>
    %cst_29 = arith.constant dense<0.000000e+00> : vector<8x128xf32>
    %166 = tpu.matmul %145, %7, %cst_29 {dimension_numbers = #tpu.dot_dimension_numbers<[1], [0], [0], [1], [0, 0, 1, 1], [], []>} : vector<8x32xf32>, vector<32x128xf32>, vector<8x128xf32> -> vector<8x128xf32>
    %167 = arith.addf %165, %166 : vector<8x128xf32>
    %168 = vector.extract_strided_slice %167 {offsets = [0, 0], sizes = [8, 96], strides = [1, 1]} : vector<8x128xf32> to vector<8x96xf32>
    %169 = arith.negf %168 : vector<8x96xf32>
    %170 = math.exp %169 : vector<8x96xf32>
    %cst_30 = arith.constant 1.000000e+00 : f32
    %171 = vector.broadcast %cst_30 : f32 to vector<8x96xf32>
    %172 = arith.addf %171, %170 : vector<8x96xf32>
    %173 = arith.divf %171, %172 : vector<8x96xf32>
    %174 = vector.extract_strided_slice %167 {offsets = [0, 96], sizes = [8, 32], strides = [1, 1]} : vector<8x128xf32> to vector<8x32xf32>
    %175 = math.tanh %174 : vector<8x32xf32>
    %176 = vector.extract_strided_slice %173 {offsets = [0, 0], sizes = [8, 32], strides = [1, 1]} : vector<8x96xf32> to vector<8x32xf32>
    %177 = vector.extract_strided_slice %173 {offsets = [0, 32], sizes = [8, 32], strides = [1, 1]} : vector<8x96xf32> to vector<8x32xf32>
    %178 = vector.extract_strided_slice %173 {offsets = [0, 64], sizes = [8, 32], strides = [1, 1]} : vector<8x96xf32> to vector<8x32xf32>
    %179 = arith.mulf %177, %143 : vector<8x32xf32>
    %180 = arith.mulf %176, %175 : vector<8x32xf32>
    %181 = arith.addf %179, %180 : vector<8x32xf32>
    %182 = math.tanh %181 : vector<8x32xf32>
    %183 = arith.mulf %178, %182 : vector<8x32xf32>
    %184 = tpu.concatenate %183, %164 in 1 : vector<8x32xf32>, vector<8x32xf32> -> vector<8x64xf32>
    %cst_31 = arith.constant dense<0.000000e+00> : vector<8x128xf32>
    %185 = tpu.matmul %184, %8, %cst_31 {dimension_numbers = #tpu.dot_dimension_numbers<[1], [0], [0], [1], [0, 0, 1, 1], [], []>} : vector<8x64xf32>, vector<64x128xf32>, vector<8x128xf32> -> vector<8x128xf32>
    %186 = arith.addf %185, %11 : vector<8x128xf32>
    %187 = vector.extract_strided_slice %186 {offsets = [0, 0], sizes = [8, 96], strides = [1, 1]} : vector<8x128xf32> to vector<8x96xf32>
    %188 = arith.negf %187 : vector<8x96xf32>
    %189 = math.exp %188 : vector<8x96xf32>
    %cst_32 = arith.constant 1.000000e+00 : f32
    %190 = vector.broadcast %cst_32 : f32 to vector<8x96xf32>
    %191 = arith.addf %190, %189 : vector<8x96xf32>
    %192 = arith.divf %190, %191 : vector<8x96xf32>
    %193 = vector.extract_strided_slice %186 {offsets = [0, 96], sizes = [8, 32], strides = [1, 1]} : vector<8x128xf32> to vector<8x32xf32>
    %194 = math.tanh %193 : vector<8x32xf32>
    %195 = vector.extract_strided_slice %192 {offsets = [0, 0], sizes = [8, 32], strides = [1, 1]} : vector<8x96xf32> to vector<8x32xf32>
    %196 = vector.extract_strided_slice %192 {offsets = [0, 32], sizes = [8, 32], strides = [1, 1]} : vector<8x96xf32> to vector<8x32xf32>
    %197 = vector.extract_strided_slice %192 {offsets = [0, 64], sizes = [8, 32], strides = [1, 1]} : vector<8x96xf32> to vector<8x32xf32>
    %198 = arith.mulf %196, %162 : vector<8x32xf32>
    %199 = arith.mulf %195, %194 : vector<8x32xf32>
    %200 = arith.addf %198, %199 : vector<8x32xf32>
    %201 = math.tanh %200 : vector<8x32xf32>
    %202 = arith.mulf %197, %201 : vector<8x32xf32>
    %203 = vector.extract_strided_slice %6 {offsets = [40, 0], sizes = [8, 128], strides = [1, 1]} : vector<64x128xf32> to vector<8x128xf32>
    %cst_33 = arith.constant dense<0.000000e+00> : vector<8x128xf32>
    %204 = tpu.matmul %183, %7, %cst_33 {dimension_numbers = #tpu.dot_dimension_numbers<[1], [0], [0], [1], [0, 0, 1, 1], [], []>} : vector<8x32xf32>, vector<32x128xf32>, vector<8x128xf32> -> vector<8x128xf32>
    %205 = arith.addf %203, %204 : vector<8x128xf32>
    %206 = vector.extract_strided_slice %205 {offsets = [0, 0], sizes = [8, 96], strides = [1, 1]} : vector<8x128xf32> to vector<8x96xf32>
    %207 = arith.negf %206 : vector<8x96xf32>
    %208 = math.exp %207 : vector<8x96xf32>
    %cst_34 = arith.constant 1.000000e+00 : f32
    %209 = vector.broadcast %cst_34 : f32 to vector<8x96xf32>
    %210 = arith.addf %209, %208 : vector<8x96xf32>
    %211 = arith.divf %209, %210 : vector<8x96xf32>
    %212 = vector.extract_strided_slice %205 {offsets = [0, 96], sizes = [8, 32], strides = [1, 1]} : vector<8x128xf32> to vector<8x32xf32>
    %213 = math.tanh %212 : vector<8x32xf32>
    %214 = vector.extract_strided_slice %211 {offsets = [0, 0], sizes = [8, 32], strides = [1, 1]} : vector<8x96xf32> to vector<8x32xf32>
    %215 = vector.extract_strided_slice %211 {offsets = [0, 32], sizes = [8, 32], strides = [1, 1]} : vector<8x96xf32> to vector<8x32xf32>
    %216 = vector.extract_strided_slice %211 {offsets = [0, 64], sizes = [8, 32], strides = [1, 1]} : vector<8x96xf32> to vector<8x32xf32>
    %217 = arith.mulf %215, %181 : vector<8x32xf32>
    %218 = arith.mulf %214, %213 : vector<8x32xf32>
    %219 = arith.addf %217, %218 : vector<8x32xf32>
    %220 = math.tanh %219 : vector<8x32xf32>
    %221 = arith.mulf %216, %220 : vector<8x32xf32>
    %222 = tpu.concatenate %221, %202 in 1 : vector<8x32xf32>, vector<8x32xf32> -> vector<8x64xf32>
    %cst_35 = arith.constant dense<0.000000e+00> : vector<8x128xf32>
    %223 = tpu.matmul %222, %8, %cst_35 {dimension_numbers = #tpu.dot_dimension_numbers<[1], [0], [0], [1], [0, 0, 1, 1], [], []>} : vector<8x64xf32>, vector<64x128xf32>, vector<8x128xf32> -> vector<8x128xf32>
    %224 = arith.addf %223, %11 : vector<8x128xf32>
    %225 = vector.extract_strided_slice %224 {offsets = [0, 0], sizes = [8, 96], strides = [1, 1]} : vector<8x128xf32> to vector<8x96xf32>
    %226 = arith.negf %225 : vector<8x96xf32>
    %227 = math.exp %226 : vector<8x96xf32>
    %cst_36 = arith.constant 1.000000e+00 : f32
    %228 = vector.broadcast %cst_36 : f32 to vector<8x96xf32>
    %229 = arith.addf %228, %227 : vector<8x96xf32>
    %230 = arith.divf %228, %229 : vector<8x96xf32>
    %231 = vector.extract_strided_slice %224 {offsets = [0, 96], sizes = [8, 32], strides = [1, 1]} : vector<8x128xf32> to vector<8x32xf32>
    %232 = math.tanh %231 : vector<8x32xf32>
    %233 = vector.extract_strided_slice %230 {offsets = [0, 0], sizes = [8, 32], strides = [1, 1]} : vector<8x96xf32> to vector<8x32xf32>
    %234 = vector.extract_strided_slice %230 {offsets = [0, 32], sizes = [8, 32], strides = [1, 1]} : vector<8x96xf32> to vector<8x32xf32>
    %235 = vector.extract_strided_slice %230 {offsets = [0, 64], sizes = [8, 32], strides = [1, 1]} : vector<8x96xf32> to vector<8x32xf32>
    %236 = arith.mulf %234, %200 : vector<8x32xf32>
    %237 = arith.mulf %233, %232 : vector<8x32xf32>
    %238 = arith.addf %236, %237 : vector<8x32xf32>
    %239 = math.tanh %238 : vector<8x32xf32>
    %240 = arith.mulf %235, %239 : vector<8x32xf32>
    %241 = vector.extract_strided_slice %6 {offsets = [48, 0], sizes = [8, 128], strides = [1, 1]} : vector<64x128xf32> to vector<8x128xf32>
    %cst_37 = arith.constant dense<0.000000e+00> : vector<8x128xf32>
    %242 = tpu.matmul %221, %7, %cst_37 {dimension_numbers = #tpu.dot_dimension_numbers<[1], [0], [0], [1], [0, 0, 1, 1], [], []>} : vector<8x32xf32>, vector<32x128xf32>, vector<8x128xf32> -> vector<8x128xf32>
    %243 = arith.addf %241, %242 : vector<8x128xf32>
    %244 = vector.extract_strided_slice %243 {offsets = [0, 0], sizes = [8, 96], strides = [1, 1]} : vector<8x128xf32> to vector<8x96xf32>
    %245 = arith.negf %244 : vector<8x96xf32>
    %246 = math.exp %245 : vector<8x96xf32>
    %cst_38 = arith.constant 1.000000e+00 : f32
    %247 = vector.broadcast %cst_38 : f32 to vector<8x96xf32>
    %248 = arith.addf %247, %246 : vector<8x96xf32>
    %249 = arith.divf %247, %248 : vector<8x96xf32>
    %250 = vector.extract_strided_slice %243 {offsets = [0, 96], sizes = [8, 32], strides = [1, 1]} : vector<8x128xf32> to vector<8x32xf32>
    %251 = math.tanh %250 : vector<8x32xf32>
    %252 = vector.extract_strided_slice %249 {offsets = [0, 0], sizes = [8, 32], strides = [1, 1]} : vector<8x96xf32> to vector<8x32xf32>
    %253 = vector.extract_strided_slice %249 {offsets = [0, 32], sizes = [8, 32], strides = [1, 1]} : vector<8x96xf32> to vector<8x32xf32>
    %254 = vector.extract_strided_slice %249 {offsets = [0, 64], sizes = [8, 32], strides = [1, 1]} : vector<8x96xf32> to vector<8x32xf32>
    %255 = arith.mulf %253, %219 : vector<8x32xf32>
    %256 = arith.mulf %252, %251 : vector<8x32xf32>
    %257 = arith.addf %255, %256 : vector<8x32xf32>
    %258 = math.tanh %257 : vector<8x32xf32>
    %259 = arith.mulf %254, %258 : vector<8x32xf32>
    %260 = tpu.concatenate %259, %240 in 1 : vector<8x32xf32>, vector<8x32xf32> -> vector<8x64xf32>
    %cst_39 = arith.constant dense<0.000000e+00> : vector<8x128xf32>
    %261 = tpu.matmul %260, %8, %cst_39 {dimension_numbers = #tpu.dot_dimension_numbers<[1], [0], [0], [1], [0, 0, 1, 1], [], []>} : vector<8x64xf32>, vector<64x128xf32>, vector<8x128xf32> -> vector<8x128xf32>
    %262 = arith.addf %261, %11 : vector<8x128xf32>
    %263 = vector.extract_strided_slice %262 {offsets = [0, 0], sizes = [8, 96], strides = [1, 1]} : vector<8x128xf32> to vector<8x96xf32>
    %264 = arith.negf %263 : vector<8x96xf32>
    %265 = math.exp %264 : vector<8x96xf32>
    %cst_40 = arith.constant 1.000000e+00 : f32
    %266 = vector.broadcast %cst_40 : f32 to vector<8x96xf32>
    %267 = arith.addf %266, %265 : vector<8x96xf32>
    %268 = arith.divf %266, %267 : vector<8x96xf32>
    %269 = vector.extract_strided_slice %262 {offsets = [0, 96], sizes = [8, 32], strides = [1, 1]} : vector<8x128xf32> to vector<8x32xf32>
    %270 = math.tanh %269 : vector<8x32xf32>
    %271 = vector.extract_strided_slice %268 {offsets = [0, 0], sizes = [8, 32], strides = [1, 1]} : vector<8x96xf32> to vector<8x32xf32>
    %272 = vector.extract_strided_slice %268 {offsets = [0, 32], sizes = [8, 32], strides = [1, 1]} : vector<8x96xf32> to vector<8x32xf32>
    %273 = vector.extract_strided_slice %268 {offsets = [0, 64], sizes = [8, 32], strides = [1, 1]} : vector<8x96xf32> to vector<8x32xf32>
    %274 = arith.mulf %272, %238 : vector<8x32xf32>
    %275 = arith.mulf %271, %270 : vector<8x32xf32>
    %276 = arith.addf %274, %275 : vector<8x32xf32>
    %277 = math.tanh %276 : vector<8x32xf32>
    %278 = arith.mulf %273, %277 : vector<8x32xf32>
    %279 = vector.extract_strided_slice %6 {offsets = [56, 0], sizes = [8, 128], strides = [1, 1]} : vector<64x128xf32> to vector<8x128xf32>
    %cst_41 = arith.constant dense<0.000000e+00> : vector<8x128xf32>
    %280 = tpu.matmul %259, %7, %cst_41 {dimension_numbers = #tpu.dot_dimension_numbers<[1], [0], [0], [1], [0, 0, 1, 1], [], []>} : vector<8x32xf32>, vector<32x128xf32>, vector<8x128xf32> -> vector<8x128xf32>
    %281 = arith.addf %279, %280 : vector<8x128xf32>
    %282 = vector.extract_strided_slice %281 {offsets = [0, 0], sizes = [8, 96], strides = [1, 1]} : vector<8x128xf32> to vector<8x96xf32>
    %283 = arith.negf %282 : vector<8x96xf32>
    %284 = math.exp %283 : vector<8x96xf32>
    %cst_42 = arith.constant 1.000000e+00 : f32
    %285 = vector.broadcast %cst_42 : f32 to vector<8x96xf32>
    %286 = arith.addf %285, %284 : vector<8x96xf32>
    %287 = arith.divf %285, %286 : vector<8x96xf32>
    %288 = vector.extract_strided_slice %281 {offsets = [0, 96], sizes = [8, 32], strides = [1, 1]} : vector<8x128xf32> to vector<8x32xf32>
    %289 = math.tanh %288 : vector<8x32xf32>
    %290 = vector.extract_strided_slice %287 {offsets = [0, 0], sizes = [8, 32], strides = [1, 1]} : vector<8x96xf32> to vector<8x32xf32>
    %291 = vector.extract_strided_slice %287 {offsets = [0, 32], sizes = [8, 32], strides = [1, 1]} : vector<8x96xf32> to vector<8x32xf32>
    %292 = vector.extract_strided_slice %287 {offsets = [0, 64], sizes = [8, 32], strides = [1, 1]} : vector<8x96xf32> to vector<8x32xf32>
    %293 = arith.mulf %291, %257 : vector<8x32xf32>
    %294 = arith.mulf %290, %289 : vector<8x32xf32>
    %295 = arith.addf %293, %294 : vector<8x32xf32>
    %296 = math.tanh %295 : vector<8x32xf32>
    %297 = arith.mulf %292, %296 : vector<8x32xf32>
    %298 = tpu.concatenate %297, %278 in 1 : vector<8x32xf32>, vector<8x32xf32> -> vector<8x64xf32>
    %cst_43 = arith.constant dense<0.000000e+00> : vector<8x128xf32>
    %299 = tpu.matmul %298, %8, %cst_43 {dimension_numbers = #tpu.dot_dimension_numbers<[1], [0], [0], [1], [0, 0, 1, 1], [], []>} : vector<8x64xf32>, vector<64x128xf32>, vector<8x128xf32> -> vector<8x128xf32>
    %300 = arith.addf %299, %11 : vector<8x128xf32>
    %301 = vector.extract_strided_slice %300 {offsets = [0, 0], sizes = [8, 96], strides = [1, 1]} : vector<8x128xf32> to vector<8x96xf32>
    %302 = arith.negf %301 : vector<8x96xf32>
    %303 = math.exp %302 : vector<8x96xf32>
    %cst_44 = arith.constant 1.000000e+00 : f32
    %304 = vector.broadcast %cst_44 : f32 to vector<8x96xf32>
    %305 = arith.addf %304, %303 : vector<8x96xf32>
    %306 = arith.divf %304, %305 : vector<8x96xf32>
    %307 = vector.extract_strided_slice %300 {offsets = [0, 96], sizes = [8, 32], strides = [1, 1]} : vector<8x128xf32> to vector<8x32xf32>
    %308 = math.tanh %307 : vector<8x32xf32>
    %309 = vector.extract_strided_slice %306 {offsets = [0, 0], sizes = [8, 32], strides = [1, 1]} : vector<8x96xf32> to vector<8x32xf32>
    %310 = vector.extract_strided_slice %306 {offsets = [0, 32], sizes = [8, 32], strides = [1, 1]} : vector<8x96xf32> to vector<8x32xf32>
    %311 = vector.extract_strided_slice %306 {offsets = [0, 64], sizes = [8, 32], strides = [1, 1]} : vector<8x96xf32> to vector<8x32xf32>
    %312 = arith.mulf %310, %276 : vector<8x32xf32>
    %313 = arith.mulf %309, %308 : vector<8x32xf32>
    %314 = arith.addf %312, %313 : vector<8x32xf32>
    %315 = math.tanh %314 : vector<8x32xf32>
    %316 = arith.mulf %311, %315 : vector<8x32xf32>
    %c0_45 = arith.constant 0 : index
    %c0_46 = arith.constant 0 : index
    %317 = vector.load %arg7[%c0_45, %c0_46] : memref<32x128xf32, #tpu.memory_space<vmem>>, vector<32x128xf32>
    %cst_47 = arith.constant dense<0.000000e+00> : vector<8x128xf32>
    %318 = tpu.matmul %316, %317, %cst_47 {dimension_numbers = #tpu.dot_dimension_numbers<[1], [0], [0], [1], [0, 0, 1, 1], [], []>} : vector<8x32xf32>, vector<32x128xf32>, vector<8x128xf32> -> vector<8x128xf32>
    %c0_48 = arith.constant 0 : index
    %c0_49 = arith.constant 0 : index
    %319 = vector.load %arg8[%c0_48, %c0_49] : memref<1x128xf32, #tpu.memory_space<vmem>>, vector<1x128xf32>
    %320 = vector.broadcast %319 : vector<1x128xf32> to vector<8x128xf32>
    %321 = arith.addf %318, %320 : vector<8x128xf32>
    %cst_50 = arith.constant 0.000000e+00 : f32
    %322 = vector.broadcast %cst_50 : f32 to vector<8x128xf32>
    %323 = arith.maximumf %321, %322 : vector<8x128xf32>
    %c0_51 = arith.constant 0 : index
    %c0_52 = arith.constant 0 : index
    %324 = vector.load %arg9[%c0_51, %c0_52] : memref<128x128xf32, #tpu.memory_space<vmem>>, vector<128x128xf32>
    %cst_53 = arith.constant dense<0.000000e+00> : vector<8x128xf32>
    %325 = tpu.matmul %323, %324, %cst_53 {dimension_numbers = #tpu.dot_dimension_numbers<[1], [0], [0], [1], [0, 0, 1, 1], [], []>} : vector<8x128xf32>, vector<128x128xf32>, vector<8x128xf32> -> vector<8x128xf32>
    %c0_54 = arith.constant 0 : index
    %c0_55 = arith.constant 0 : index
    %326 = vector.load %arg10[%c0_54, %c0_55] : memref<1x128xf32, #tpu.memory_space<vmem>>, vector<1x128xf32>
    %327 = vector.broadcast %326 : vector<1x128xf32> to vector<8x128xf32>
    %328 = arith.addf %325, %327 : vector<8x128xf32>
    %c0_56 = arith.constant 0 : index
    %c0_57 = arith.constant 0 : index
    %329 = vector.load %arg11[%c0_56, %c0_57] : memref<8x128xf32, #tpu.memory_space<vmem>>, vector<8x128xf32>
    tpu.vector_store %arg11[%c0_56, %c0_57], %328 {strides = array<i32>} : memref<8x128xf32, #tpu.memory_space<vmem>>, vector<8x128xf32>,
    return
  }
  func.func @transform_0(%arg0: i32) -> (i32, i32, i32) {
    %c0_i32 = arith.constant 0 : i32
    %c0_i32_0 = arith.constant 0 : i32
    %c0_i32_1 = arith.constant 0 : i32
    return %c0_i32, %arg0, %c0_i32_0 : i32, i32, i32
  }
  func.func @transform_1(%arg0: i32) -> (i32, i32) {
    %c0_i32 = arith.constant 0 : i32
    %c0_i32_0 = arith.constant 0 : i32
    %c0_i32_1 = arith.constant 0 : i32
    return %c0_i32, %c0_i32_0 : i32, i32
  }
  func.func @transform_2(%arg0: i32) -> (i32, i32) {
    %c0_i32 = arith.constant 0 : i32
    %c0_i32_0 = arith.constant 0 : i32
    %c0_i32_1 = arith.constant 0 : i32
    return %c0_i32, %c0_i32_0 : i32, i32
  }
  func.func @transform_3(%arg0: i32) -> (i32, i32) {
    %c0_i32 = arith.constant 0 : i32
    %c0_i32_0 = arith.constant 0 : i32
    %c0_i32_1 = arith.constant 0 : i32
    return %c0_i32, %c0_i32_0 : i32, i32
  }
  func.func @transform_4(%arg0: i32) -> (i32, i32) {
    %c0_i32 = arith.constant 0 : i32
    %c0_i32_0 = arith.constant 0 : i32
    %c0_i32_1 = arith.constant 0 : i32
    return %c0_i32, %c0_i32_0 : i32, i32
  }
  func.func @transform_5(%arg0: i32) -> (i32, i32) {
    %c0_i32 = arith.constant 0 : i32
    %c0_i32_0 = arith.constant 0 : i32
    %c0_i32_1 = arith.constant 0 : i32
    return %c0_i32, %c0_i32_0 : i32, i32
  }
  func.func @transform_6(%arg0: i32) -> (i32, i32) {
    %c0_i32 = arith.constant 0 : i32
    %c0_i32_0 = arith.constant 0 : i32
    %c0_i32_1 = arith.constant 0 : i32
    return %c0_i32, %c0_i32_0 : i32, i32
  }
  func.func @transform_7(%arg0: i32) -> (i32, i32) {
    %c0_i32 = arith.constant 0 : i32
    %c0_i32_0 = arith.constant 0 : i32
    %c0_i32_1 = arith.constant 0 : i32
    return %c0_i32, %c0_i32_0 : i32, i32
  }
  func.func @transform_8(%arg0: i32) -> (i32, i32) {
    %c0_i32 = arith.constant 0 : i32
    %c0_i32_0 = arith.constant 0 : i32
    %c0_i32_1 = arith.constant 0 : i32
    return %c0_i32, %c0_i32_0 : i32, i32
  }
  func.func @transform_9(%arg0: i32) -> (i32, i32) {
    %c0_i32 = arith.constant 0 : i32
    %c0_i32_0 = arith.constant 0 : i32
    %c0_i32_1 = arith.constant 0 : i32
    return %c0_i32, %c0_i32_0 : i32, i32
  }
  func.func @transform_10(%arg0: i32) -> (i32, i32) {
    %c0_i32 = arith.constant 0 : i32
    %c0_i32_0 = arith.constant 0 : i32
    return %arg0, %c0_i32 : i32, i32
  }
}

</mosaic_0001>

<llo_original>
// kernel: lstm_model_forward.1
$region0: #{lstm_model_forward.1}
  #allocation0 [shape = 'u32[]', space=smem, size = 0x4, offset = 0x4, fixed_abs, tag = 'smem constant byte address 0x4 - core index']
  #allocation1 [shape = 'u32[144,128]{1,0:T(1,128)}', space=vmem, size = 0x12000, scoped, tag = 'internal scratch']
  %s0 = inlined_call_operand.vmem [shape: f32[8,8,16], index: 0, kind: input, shape index: {}]
  %s1 = inlined_call_operand.vmem [shape: f32[16,128], index: 1, kind: input, shape index: {}]
  %s2 = inlined_call_operand.vmem [shape: f32[32,128], index: 2, kind: input, shape index: {}]
  %s3 = inlined_call_operand.vmem [shape: f32[1,128], index: 3, kind: input, shape index: {}]
  %s4 = inlined_call_operand.vmem [shape: f32[64,128], index: 4, kind: input, shape index: {}]
  %s5 = inlined_call_operand.vmem [shape: f32[1,128], index: 5, kind: input, shape index: {}]
  %s6 = inlined_call_operand.vmem [shape: f32[32,128], index: 6, kind: input, shape index: {}]
  %s7 = inlined_call_operand.vmem [shape: f32[1,128], index: 7, kind: input, shape index: {}]
  %s8 = inlined_call_operand.vmem [shape: f32[128,128], index: 8, kind: input, shape index: {}]
  %s9 = inlined_call_operand.vmem [shape: f32[1,128], index: 9, kind: input, shape index: {}]
  %s10 = inlined_call_operand.vmem [shape: f32[8,128], index: 10, kind: output, shape index: {}]
  %s11 = sld [smem:[#allocation0]]
  $region50: #{lstm_model_forward.1} parent=0
    _
  %s13 = ssub.s32 1, %s11
  %s14 = scalar_select 0, %s13, %s11
  // Predicated region
  $region2: #{lstm_model_forward.1} parent=0 // pred_check
    _
  $region3: #{lstm_model_forward.1} parent=0 // pred_check_branch
    %16 = sbr.rel (0) target = $region5
  $region4: #{lstm_model_forward.1} parent=0 // pred_region
    _
  $region5: #{lstm_model_forward.1} parent=0 // pred_fallthru
    _
  // Predicated region
  $region6: #{lstm_model_forward.1} parent=0 // pred_check
    _
  $region7: #{lstm_model_forward.1} parent=0 // pred_check_branch
    %18 = sbr.rel (0) target = $region9
  $region8: #{lstm_model_forward.1} parent=0 // pred_region
    _
  $region9: #{lstm_model_forward.1} parent=0 // pred_fallthru
    _
  // Predicated region
  $region10: #{lstm_model_forward.1} parent=0 // pred_check
    _
  $region11: #{lstm_model_forward.1} parent=0 // pred_check_branch
    %20 = sbr.rel (0) target = $region13
  $region12: #{lstm_model_forward.1} parent=0 // pred_region
    _
  $region13: #{lstm_model_forward.1} parent=0 // pred_fallthru
    _
  // Predicated region
  $region14: #{lstm_model_forward.1} parent=0 // pred_check
    _
  $region15: #{lstm_model_forward.1} parent=0 // pred_check_branch
    %22 = sbr.rel (0) target = $region17
  $region16: #{lstm_model_forward.1} parent=0 // pred_region
    _
  $region17: #{lstm_model_forward.1} parent=0 // pred_fallthru
    _
  // Predicated region
  $region18: #{lstm_model_forward.1} parent=0 // pred_check
    _
  $region19: #{lstm_model_forward.1} parent=0 // pred_check_branch
    %24 = sbr.rel (0) target = $region21
  $region20: #{lstm_model_forward.1} parent=0 // pred_region
    _
  $region21: #{lstm_model_forward.1} parent=0 // pred_fallthru
    _
  // Predicated region
  $region22: #{lstm_model_forward.1} parent=0 // pred_check
    _
  $region23: #{lstm_model_forward.1} parent=0 // pred_check_branch
    %26 = sbr.rel (0) target = $region25
  $region24: #{lstm_model_forward.1} parent=0 // pred_region
    _
  $region25: #{lstm_model_forward.1} parent=0 // pred_fallthru
    _
  // Predicated region
  $region26: #{lstm_model_forward.1} parent=0 // pred_check
    _
  $region27: #{lstm_model_forward.1} parent=0 // pred_check_branch
    %28 = sbr.rel (0) target = $region29
  $region28: #{lstm_model_forward.1} parent=0 // pred_region
    _
  $region29: #{lstm_model_forward.1} parent=0 // pred_fallthru
    _
  // Predicated region
  $region30: #{lstm_model_forward.1} parent=0 // pred_check
    _
  $region31: #{lstm_model_forward.1} parent=0 // pred_check_branch
    %30 = sbr.rel (0) target = $region33
  $region32: #{lstm_model_forward.1} parent=0 // pred_region
    _
  $region33: #{lstm_model_forward.1} parent=0 // pred_fallthru
    _
  // Predicated region
  $region34: #{lstm_model_forward.1} parent=0 // pred_check
    _
  $region35: #{lstm_model_forward.1} parent=0 // pred_check_branch
    %32 = sbr.rel (0) target = $region37
  $region36: #{lstm_model_forward.1} parent=0 // pred_region
    _
  $region37: #{lstm_model_forward.1} parent=0 // pred_fallthru
    _
  // Predicated region
  $region38: #{lstm_model_forward.1} parent=0 // pred_check
    _
  $region39: #{lstm_model_forward.1} parent=0 // pred_check_branch
    %34 = sbr.rel (0) target = $region41
  $region40: #{lstm_model_forward.1} parent=0 // pred_region
    _
  $region41: #{lstm_model_forward.1} parent=0 // pred_fallthru
    _
  %v35 = vld [vmem:[%s0] sm:$0xff]
  %v36 = vld [vmem:[%s0 + $0x8] sm:$0xff]
  %v37 = vld [vmem:[%s0 + $0x10] sm:$0xff]
  %v38 = vld [vmem:[%s0 + $0x18] sm:$0xff]
  %v39 = vld [vmem:[%s0 + $0x20] sm:$0xff]
  %v40 = vld [vmem:[%s0 + $0x28] sm:$0xff]
  %v41 = vld [vmem:[%s0 + $0x30] sm:$0xff]
  %v42 = vld [vmem:[%s0 + $0x38] sm:$0xff]
  %v43 = vld [vmem:[%s1] sm:$0xff]
  %v44 = vld [vmem:[%s1 + $0x8] sm:$0xff]
  %v45 = vld [vmem:[%s3] sm:$0x1]
  %v47 = vlaneseq
  %v48 = vshrl.u32 %v47, 7
  %v49 = vsub.s32 0, %v48
  %v50 = vrot.slane %v45, %v49
  %vm52 = vcmask 130048
  %v54 = vsel %vm52, %v35, 0
  %v57 = vsel %vm52, %v36, 0
  %v60 = vsel %vm52, %v37, 0
  %v63 = vsel %vm52, %v38, 0
  %v66 = vsel %vm52, %v39, 0
  %v69 = vsel %vm52, %v40, 0
  %v72 = vsel %vm52, %v41, 0
  %v75 = vsel %vm52, %v42, 0
  %77 = vmatprep.subr.mxu0 0.0
  %78 = vmatpush1.msra.mxu0 %v43
  %79 = vmatprep.subr.mxu0 0.0
  %80 = vmatpush1.msra.mxu0 %v44
  %81 = vmatprep.subr.mxu0 0.0
  %82 = vmatpush1.msra.mxu0 0.0
  %83 = vmatprep.subr.mxu0 0.0
  %84 = vmatpush1.msra.mxu0 0.0
  %85 = vmatprep.subr.mxu0 0.0
  %86 = vmatpush1.msra.mxu0 0.0
  %87 = vmatprep.subr.mxu0 0.0
  %88 = vmatpush1.msra.mxu0 0.0
  %89 = vmatprep.subr.mxu0 0.0
  %90 = vmatpush1.msra.mxu0 0.0
  %91 = vmatprep.subr.mxu0 0.0
  %92 = vmatpush1.msra.mxu0 0.0
  %93 = vmatprep.subr.mxu0 0.0
  %94 = vmatpush1.msra.mxu0 0.0
  %95 = vmatprep.subr.mxu0 0.0
  %96 = vmatpush1.msra.mxu0 0.0
  %97 = vmatprep.subr.mxu0 0.0
  %98 = vmatpush1.msra.mxu0 0.0
  %99 = vmatprep.subr.mxu0 0.0
  %100 = vmatpush1.msra.mxu0 0.0
  %101 = vmatprep.subr.mxu0 0.0
  %102 = vmatpush1.msra.mxu0 0.0
  %103 = vmatprep.subr.mxu0 0.0
  %104 = vmatpush1.msra.mxu0 0.0
  %105 = vmatprep.subr.mxu0 0.0
  %106 = vmatpush1.msra.mxu0 0.0
  %107 = vmatprep.subr.mxu0 0.0
  %108 = vmatpush1.msra.mxu0 0.0
  %109 = vmatprep.subr.mxu0 0.0
  %110 = vmatpush1.msra.mxu0 0.0
  %111 = vmatprep.subr.mxu0 0.0
  %112 = vmatpush1.msra.mxu0 0.0
  %113 = vmatprep.subr.mxu0 0.0
  %114 = vmatpush1.msra.mxu0 0.0
  %115 = vmatprep.subr.mxu0 0.0
  %116 = vmatpush1.msra.mxu0 0.0
  %117 = vmatprep.subr.mxu0 0.0
  %118 = vmatpush1.msra.mxu0 0.0
  %119 = vmatprep.subr.mxu0 0.0
  %120 = vmatpush1.msra.mxu0 0.0
  %121 = vmatprep.subr.mxu0 0.0
  %122 = vmatpush1.msra.mxu0 0.0
  %123 = vmatprep.subr.mxu0 0.0
  %124 = vmatpush1.msra.mxu0 0.0
  %125 = vmatprep.subr.mxu0 0.0
  %126 = vmatpush1.msra.mxu0 0.0
  %127 = vmatprep.subr.mxu0 0.0
  %128 = vmatpush1.msra.mxu0 0.0
  %129 = vmatprep.subr.mxu0 0.0
  %130 = vmatpush1.msra.mxu0 0.0
  %131 = vmatprep.subr.mxu0 0.0
  %132 = vmatpush1.msra.mxu0 0.0
  %133 = vmatprep.subr.mxu0 0.0
  %134 = vmatpush1.msra.mxu0 0.0
  %135 = vmatprep.subr.mxu0 0.0
  %136 = vmatpush1.msra.mxu0 0.0
  %137 = vmatprep.subr.mxu0 0.0
  %138 = vmatpush1.msra.mxu0 0.0
  %139 = vmatprep.subr.mxu0 0.0
  %140 = vmatpush1.msra.mxu0 0.0
  %141 = vmatprep.mubr.f32.mxu0 0.0
  %142 = vmatmul.mubr.f32.gmra.mrb[0].mxu0 %v54
  %v143 = vpop.f32.mrb[0].mxu0
  %v144 = vadd.f32 %v50, %v143
  %v145 = vpop.f32.mrb[0].mxu0
  %146 = vmatprep.mubr.f32.mxu0 0.0
  %147 = vmatmul.mubr.f32.gmra.mrb[0].mxu0 %v57
  %v148 = vpop.f32.mrb[0].mxu0
  %v149 = vadd.f32 %v50, %v148
  %v150 = vpop.f32.mrb[0].mxu0
  %151 = vmatprep.mubr.f32.mxu0 0.0
  %152 = vmatmul.mubr.f32.gmra.mrb[0].mxu0 %v60
  %v153 = vpop.f32.mrb[0].mxu0
  %v154 = vadd.f32 %v50, %v153
  %v155 = vpop.f32.mrb[0].mxu0
  %156 = vmatprep.mubr.f32.mxu0 0.0
  %157 = vmatmul.mubr.f32.gmra.mrb[0].mxu0 %v63
  %v158 = vpop.f32.mrb[0].mxu0
  %v159 = vadd.f32 %v50, %v158
  %v160 = vpop.f32.mrb[0].mxu0
  %161 = vmatprep.mubr.f32.mxu0 0.0
  %162 = vmatmul.mubr.f32.gmra.mrb[0].mxu0 %v66
  %v163 = vpop.f32.mrb[0].mxu0
  %v164 = vadd.f32 %v50, %v163
  %v165 = vpop.f32.mrb[0].mxu0
  %166 = vmatprep.mubr.f32.mxu0 0.0
  %167 = vmatmul.mubr.f32.gmra.mrb[0].mxu0 %v69
  %v168 = vpop.f32.mrb[0].mxu0
  %v169 = vadd.f32 %v50, %v168
  %v170 = vpop.f32.mrb[0].mxu0
  %171 = vmatprep.mubr.f32.mxu0 0.0
  %172 = vmatmul.mubr.f32.gmra.mrb[0].mxu0 %v72
  %v173 = vpop.f32.mrb[0].mxu0
  %v174 = vadd.f32 %v50, %v173
  %v175 = vpop.f32.mrb[0].mxu0
  %176 = vmatprep.mubr.f32.mxu0 0.0
  %177 = vmatmul.mubr.f32.gmra.mrb[0].mxu0 %v75
  %v178 = vpop.f32.mrb[0].mxu0
  %v179 = vadd.f32 %v50, %v178
  %v180 = vpop.f32.mrb[0].mxu0
  %181 = vdwg.mxu0
  %v182 = vld [vmem:[%s2] sm:$0xff]
  %v183 = vld [vmem:[%s2 + $0x8] sm:$0xff]
  %v184 = vld [vmem:[%s2 + $0x10] sm:$0xff]
  %v185 = vld [vmem:[%s2 + $0x18] sm:$0xff]
  %v186 = vld [vmem:[%s4] sm:$0xff]
  %v187 = vld [vmem:[%s4 + $0x8] sm:$0xff]
  %v188 = vld [vmem:[%s4 + $0x10] sm:$0xff]
  %v189 = vld [vmem:[%s4 + $0x18] sm:$0xff]
  %v190 = vld [vmem:[%s4 + $0x20] sm:$0xff]
  %v191 = vld [vmem:[%s4 + $0x28] sm:$0xff]
  %v192 = vld [vmem:[%s4 + $0x30] sm:$0xff]
  %v193 = vld [vmem:[%s4 + $0x38] sm:$0xff]
  %v194 = vld [vmem:[%s5] sm:$0x1]
  %v196 = vlaneseq
  %v197 = vshrl.u32 %v196, 7
  %v198 = vsub.s32 0, %v197
  %v199 = vrot.slane %v194, %v198
  %vm201 = vcmask 261120
  %v203 = vsel %vm201, 0.0, 0
  %205 = vmatprep.subr.mxu0 0.0
  %206 = vmatpush1.msra.mxu0 %v182
  %207 = vmatprep.subr.mxu0 0.0
  %208 = vmatpush1.msra.mxu0 %v183
  %209 = vmatprep.subr.mxu0 0.0
  %210 = vmatpush1.msra.mxu0 %v184
  %211 = vmatprep.subr.mxu0 0.0
  %212 = vmatpush1.msra.mxu0 %v185
  %213 = vmatprep.subr.mxu0 0.0
  %214 = vmatpush1.msra.mxu0 0.0
  %215 = vmatprep.subr.mxu0 0.0
  %216 = vmatpush1.msra.mxu0 0.0
  %217 = vmatprep.subr.mxu0 0.0
  %218 = vmatpush1.msra.mxu0 0.0
  %219 = vmatprep.subr.mxu0 0.0
  %220 = vmatpush1.msra.mxu0 0.0
  %221 = vmatprep.subr.mxu0 0.0
  %222 = vmatpush1.msra.mxu0 0.0
  %223 = vmatprep.subr.mxu0 0.0
  %224 = vmatpush1.msra.mxu0 0.0
  %225 = vmatprep.subr.mxu0 0.0
  %226 = vmatpush1.msra.mxu0 0.0
  %227 = vmatprep.subr.mxu0 0.0
  %228 = vmatpush1.msra.mxu0 0.0
  %229 = vmatprep.subr.mxu0 0.0
  %230 = vmatpush1.msra.mxu0 0.0
  %231 = vmatprep.subr.mxu0 0.0
  %232 = vmatpush1.msra.mxu0 0.0
  %233 = vmatprep.subr.mxu0 0.0
  %234 = vmatpush1.msra.mxu0 0.0
  %235 = vmatprep.subr.mxu0 0.0
  %236 = vmatpush1.msra.mxu0 0.0
  %237 = vmatprep.subr.mxu0 0.0
  %238 = vmatpush1.msra.mxu0 0.0
  %239 = vmatprep.subr.mxu0 0.0
  %240 = vmatpush1.msra.mxu0 0.0
  %241 = vmatprep.subr.mxu0 0.0
  %242 = vmatpush1.msra.mxu0 0.0
  %243 = vmatprep.subr.mxu0 0.0
  %244 = vmatpush1.msra.mxu0 0.0
  %245 = vmatprep.subr.mxu0 0.0
  %246 = vmatpush1.msra.mxu0 0.0
  %247 = vmatprep.subr.mxu0 0.0
  %248 = vmatpush1.msra.mxu0 0.0
  %249 = vmatprep.subr.mxu0 0.0
  %250 = vmatpush1.msra.mxu0 0.0
  %251 = vmatprep.subr.mxu0 0.0
  %252 = vmatpush1.msra.mxu0 0.0
  %253 = vmatprep.subr.mxu0 0.0
  %254 = vmatpush1.msra.mxu0 0.0
  %255 = vmatprep.subr.mxu0 0.0
  %256 = vmatpush1.msra.mxu0 0.0
  %257 = vmatprep.subr.mxu0 0.0
  %258 = vmatpush1.msra.mxu0 0.0
  %259 = vmatprep.subr.mxu0 0.0
  %260 = vmatpush1.msra.mxu0 0.0
  %261 = vmatprep.subr.mxu0 0.0
  %262 = vmatpush1.msra.mxu0 0.0
  %263 = vmatprep.subr.mxu0 0.0
  %264 = vmatpush1.msra.mxu0 0.0
  %265 = vmatprep.subr.mxu0 0.0
  %266 = vmatpush1.msra.mxu0 0.0
  %267 = vmatprep.subr.mxu0 0.0
  %268 = vmatpush1.msra.mxu0 0.0
  %269 = vmatprep.mubr.f32.mxu0 0.0
  %270 = vmatmul.mubr.f32.gmra.mrb[0].mxu0 %v203
  %v271 = vpop.f32.mrb[0].mxu0
  %v272 = vadd.f32 0.0, %v271
  %v273 = vpop.f32.mrb[0].mxu0
  %274 = vdwg.mxu0
  %v275 = vadd.f32 %v144, %v272
  %v276 = vxor.u32 %v275, 2147483648
  %v277 = vmul.f32 %v276, 1.442695
  %v278 = vpow.pop %v277
  %v279 = vadd.f32 %v278, 1.0
  %v280 = vrcp.pop %v279
  %v281 = vmul.f32 1.0, %v280
  %v282 = vtanh.pop %v275
  %v283 = vmul.f32 %v281, 0.0
  %285 = vrot.lane.b32.xlu0 %v282, 32
  %v286 = vpop.permute.xlu0 %285
  %v288 = vmul.f32 %v281, %v286
  %290 = vrot.lane.b32.xlu0 %v288, 32
  %v291 = vpop.permute.xlu0 %290
  %v293 = vadd.f32 %v283, %v291
  %v294 = vtanh.pop %v293
  %296 = vrot.lane.b32.xlu0 %v294, 32
  %v297 = vpop.permute.xlu0 %296
  %v299 = vmul.f32 %v281, %v297
  %301 = vrot.lane.b32.xlu0 %v299, 64
  %v302 = vpop.permute.xlu0 %301
  %v304 = vsel %vm201, %v302, 0.0
  %vm305 = vcmask 523264
  %v307 = vsel %vm305, %v304, 0
  %309 = vmatprep.subr.mxu0 0.0
  %310 = vmatpush1.msra.mxu0 %v186
  %311 = vmatprep.subr.mxu0 0.0
  %312 = vmatpush1.msra.mxu0 %v187
  %313 = vmatprep.subr.mxu0 0.0
  %314 = vmatpush1.msra.mxu0 %v188
  %315 = vmatprep.subr.mxu0 0.0
  %316 = vmatpush1.msra.mxu0 %v189
  %317 = vmatprep.subr.mxu0 0.0
  %318 = vmatpush1.msra.mxu0 %v190
  %319 = vmatprep.subr.mxu0 0.0
  %320 = vmatpush1.msra.mxu0 %v191
  %321 = vmatprep.subr.mxu0 0.0
  %322 = vmatpush1.msra.mxu0 %v192
  %323 = vmatprep.subr.mxu0 0.0
  %324 = vmatpush1.msra.mxu0 %v193
  %325 = vmatprep.subr.mxu0 0.0
  %326 = vmatpush1.msra.mxu0 0.0
  %327 = vmatprep.subr.mxu0 0.0
  %328 = vmatpush1.msra.mxu0 0.0
  %329 = vmatprep.subr.mxu0 0.0
  %330 = vmatpush1.msra.mxu0 0.0
  %331 = vmatprep.subr.mxu0 0.0
  %332 = vmatpush1.msra.mxu0 0.0
  %333 = vmatprep.subr.mxu0 0.0
  %334 = vmatpush1.msra.mxu0 0.0
  %335 = vmatprep.subr.mxu0 0.0
  %336 = vmatpush1.msra.mxu0 0.0
  %337 = vmatprep.subr.mxu0 0.0
  %338 = vmatpush1.msra.mxu0 0.0
  %339 = vmatprep.subr.mxu0 0.0
  %340 = vmatpush1.msra.mxu0 0.0
  %341 = vmatprep.subr.mxu0 0.0
  %342 = vmatpush1.msra.mxu0 0.0
  %343 = vmatprep.subr.mxu0 0.0
  %344 = vmatpush1.msra.mxu0 0.0
  %345 = vmatprep.subr.mxu0 0.0
  %346 = vmatpush1.msra.mxu0 0.0
  %347 = vmatprep.subr.mxu0 0.0
  %348 = vmatpush1.msra.mxu0 0.0
  %349 = vmatprep.subr.mxu0 0.0
  %350 = vmatpush1.msra.mxu0 0.0
  %351 = vmatprep.subr.mxu0 0.0
  %352 = vmatpush1.msra.mxu0 0.0
  %353 = vmatprep.subr.mxu0 0.0
  %354 = vmatpush1.msra.mxu0 0.0
  %355 = vmatprep.subr.mxu0 0.0
  %356 = vmatpush1.msra.mxu0 0.0
  %357 = vmatprep.subr.mxu0 0.0
  %358 = vmatpush1.msra.mxu0 0.0
  %359 = vmatprep.subr.mxu0 0.0
  %360 = vmatpush1.msra.mxu0 0.0
  %361 = vmatprep.subr.mxu0 0.0
  %362 = vmatpush1.msra.mxu0 0.0
  %363 = vmatprep.subr.mxu0 0.0
  %364 = vmatpush1.msra.mxu0 0.0
  %365 = vmatprep.subr.mxu0 0.0
  %366 = vmatpush1.msra.mxu0 0.0
  %367 = vmatprep.subr.mxu0 0.0
  %368 = vmatpush1.msra.mxu0 0.0
  %369 = vmatprep.subr.mxu0 0.0
  %370 = vmatpush1.msra.mxu0 0.0
  %371 = vmatprep.subr.mxu0 0.0
  %372 = vmatpush1.msra.mxu0 0.0
  %373 = vmatprep.mubr.f32.mxu0 0.0
  %374 = vmatmul.mubr.f32.gmra.mrb[0].mxu0 %v307
  %v375 = vpop.f32.mrb[0].mxu0
  %v376 = vadd.f32 %v199, %v375
  %v377 = vpop.f32.mrb[0].mxu0
  %378 = vdwg.mxu0
  %v379 = vxor.u32 %v376, 2147483648
  %v380 = vmul.f32 %v379, 1.442695
  %v381 = vpow.pop %v380
  %v382 = vadd.f32 %v381, 1.0
  %v383 = vrcp.pop %v382
  %v384 = vmul.f32 1.0, %v383
  %v385 = vtanh.pop %v376
  %v386 = vmul.f32 %v384, 0.0
  %388 = vrot.lane.b32.xlu0 %v385, 32
  %v389 = vpop.permute.xlu0 %388
  %v391 = vmul.f32 %v384, %v389
  %393 = vrot.lane.b32.xlu0 %v391, 32
  %v394 = vpop.permute.xlu0 %393
  %v396 = vadd.f32 %v386, %v394
  %v397 = vtanh.pop %v396
  %399 = vrot.lane.b32.xlu0 %v397, 32
  %v400 = vpop.permute.xlu0 %399
  %v402 = vmul.f32 %v384, %v400
  %v403 = vsel %vm201, %v302, 0
  %405 = vmatprep.subr.mxu0 0.0
  %406 = vmatpush1.msra.mxu0 %v182
  %407 = vmatprep.subr.mxu0 0.0
  %408 = vmatpush1.msra.mxu0 %v183
  %409 = vmatprep.subr.mxu0 0.0
  %410 = vmatpush1.msra.mxu0 %v184
  %411 = vmatprep.subr.mxu0 0.0
  %412 = vmatpush1.msra.mxu0 %v185
  %413 = vmatprep.subr.mxu0 0.0
  %414 = vmatpush1.msra.mxu0 0.0
  %415 = vmatprep.subr.mxu0 0.0
  %416 = vmatpush1.msra.mxu0 0.0
  %417 = vmatprep.subr.mxu0 0.0
  %418 = vmatpush1.msra.mxu0 0.0
  %419 = vmatprep.subr.mxu0 0.0
  %420 = vmatpush1.msra.mxu0 0.0
  %421 = vmatprep.subr.mxu0 0.0
  %422 = vmatpush1.msra.mxu0 0.0
  %423 = vmatprep.subr.mxu0 0.0
  %424 = vmatpush1.msra.mxu0 0.0
  %425 = vmatprep.subr.mxu0 0.0
  %426 = vmatpush1.msra.mxu0 0.0
  %427 = vmatprep.subr.mxu0 0.0
  %428 = vmatpush1.msra.mxu0 0.0
  %429 = vmatprep.subr.mxu0 0.0
  %430 = vmatpush1.msra.mxu0 0.0
  %431 = vmatprep.subr.mxu0 0.0
  %432 = vmatpush1.msra.mxu0 0.0
  %433 = vmatprep.subr.mxu0 0.0
  %434 = vmatpush1.msra.mxu0 0.0
  %435 = vmatprep.subr.mxu0 0.0
  %436 = vmatpush1.msra.mxu0 0.0
  %437 = vmatprep.subr.mxu0 0.0
  %438 = vmatpush1.msra.mxu0 0.0
  %439 = vmatprep.subr.mxu0 0.0
  %440 = vmatpush1.msra.mxu0 0.0
  %441 = vmatprep.subr.mxu0 0.0
  %442 = vmatpush1.msra.mxu0 0.0
  %443 = vmatprep.subr.mxu0 0.0
  %444 = vmatpush1.msra.mxu0 0.0
  %445 = vmatprep.subr.mxu0 0.0
  %446 = vmatpush1.msra.mxu0 0.0
  %447 = vmatprep.subr.mxu0 0.0
  %448 = vmatpush1.msra.mxu0 0.0
  %449 = vmatprep.subr.mxu0 0.0
  %450 = vmatpush1.msra.mxu0 0.0
  %451 = vmatprep.subr.mxu0 0.0
  %452 = vmatpush1.msra.mxu0 0.0
  %453 = vmatprep.subr.mxu0 0.0
  %454 = vmatpush1.msra.mxu0 0.0
  %455 = vmatprep.subr.mxu0 0.0
  %456 = vmatpush1.msra.mxu0 0.0
  %457 = vmatprep.subr.mxu0 0.0
  %458 = vmatpush1.msra.mxu0 0.0
  %459 = vmatprep.subr.mxu0 0.0
  %460 = vmatpush1.msra.mxu0 0.0
  %461 = vmatprep.subr.mxu0 0.0
  %462 = vmatpush1.msra.mxu0 0.0
  %463 = vmatprep.subr.mxu0 0.0
  %464 = vmatpush1.msra.mxu0 0.0
  %465 = vmatprep.subr.mxu0 0.0
  %466 = vmatpush1.msra.mxu0 0.0
  %467 = vmatprep.subr.mxu0 0.0
  %468 = vmatpush1.msra.mxu0 0.0
  %469 = vmatprep.mubr.f32.mxu0 0.0
  %470 = vmatmul.mubr.f32.gmra.mrb[0].mxu0 %v403
  %v471 = vpop.f32.mrb[0].mxu0
  %v472 = vadd.f32 0.0, %v471
  %v473 = vpop.f32.mrb[0].mxu0
  %474 = vdwg.mxu0
  %v475 = vadd.f32 %v149, %v472
  %v476 = vxor.u32 %v475, 2147483648
  %v477 = vmul.f32 %v476, 1.442695
  %v478 = vpow.pop %v477
  %v479 = vadd.f32 %v478, 1.0
  %v480 = vrcp.pop %v479
  %v481 = vmul.f32 1.0, %v480
  %v482 = vtanh.pop %v475
  %v483 = vmul.f32 %v481, %v293
  %485 = vrot.lane.b32.xlu0 %v482, 32
  %v486 = vpop.permute.xlu0 %485
  %v488 = vmul.f32 %v481, %v486
  %490 = vrot.lane.b32.xlu0 %v488, 32
  %v491 = vpop.permute.xlu0 %490
  %v493 = vadd.f32 %v483, %v491
  %v494 = vtanh.pop %v493
  %496 = vrot.lane.b32.xlu0 %v494, 32
  %v497 = vpop.permute.xlu0 %496
  %v499 = vmul.f32 %v481, %v497
  %501 = vrot.lane.b32.xlu0 %v499, 64
  %v502 = vpop.permute.xlu0 %501
  %505 = vrot.lane.b32.xlu0 %v402, 96
  %v506 = vpop.permute.xlu0 %505
  %v508 = vsel %vm201, %v502, %v506
  %v510 = vsel %vm305, %v508, 0
  %512 = vmatprep.subr.mxu0 0.0
  %513 = vmatpush1.msra.mxu0 %v186
  %514 = vmatprep.subr.mxu0 0.0
  %515 = vmatpush1.msra.mxu0 %v187
  %516 = vmatprep.subr.mxu0 0.0
  %517 = vmatpush1.msra.mxu0 %v188
  %518 = vmatprep.subr.mxu0 0.0
  %519 = vmatpush1.msra.mxu0 %v189
  %520 = vmatprep.subr.mxu0 0.0
  %521 = vmatpush1.msra.mxu0 %v190
  %522 = vmatprep.subr.mxu0 0.0
  %523 = vmatpush1.msra.mxu0 %v191
  %524 = vmatprep.subr.mxu0 0.0
  %525 = vmatpush1.msra.mxu0 %v192
  %526 = vmatprep.subr.mxu0 0.0
  %527 = vmatpush1.msra.mxu0 %v193
  %528 = vmatprep.subr.mxu0 0.0
  %529 = vmatpush1.msra.mxu0 0.0
  %530 = vmatprep.subr.mxu0 0.0
  %531 = vmatpush1.msra.mxu0 0.0
  %532 = vmatprep.subr.mxu0 0.0
  %533 = vmatpush1.msra.mxu0 0.0
  %534 = vmatprep.subr.mxu0 0.0
  %535 = vmatpush1.msra.mxu0 0.0
  %536 = vmatprep.subr.mxu0 0.0
  %537 = vmatpush1.msra.mxu0 0.0
  %538 = vmatprep.subr.mxu0 0.0
  %539 = vmatpush1.msra.mxu0 0.0
  %540 = vmatprep.subr.mxu0 0.0
  %541 = vmatpush1.msra.mxu0 0.0
  %542 = vmatprep.subr.mxu0 0.0
  %543 = vmatpush1.msra.mxu0 0.0
  %544 = vmatprep.subr.mxu0 0.0
  %545 = vmatpush1.msra.mxu0 0.0
  %546 = vmatprep.subr.mxu0 0.0
  %547 = vmatpush1.msra.mxu0 0.0
  %548 = vmatprep.subr.mxu0 0.0
  %549 = vmatpush1.msra.mxu0 0.0
  %550 = vmatprep.subr.mxu0 0.0
  %551 = vmatpush1.msra.mxu0 0.0
  %552 = vmatprep.subr.mxu0 0.0
  %553 = vmatpush1.msra.mxu0 0.0
  %554 = vmatprep.subr.mxu0 0.0
  %555 = vmatpush1.msra.mxu0 0.0
  %556 = vmatprep.subr.mxu0 0.0
  %557 = vmatpush1.msra.mxu0 0.0
  %558 = vmatprep.subr.mxu0 0.0
  %559 = vmatpush1.msra.mxu0 0.0
  %560 = vmatprep.subr.mxu0 0.0
  %561 = vmatpush1.msra.mxu0 0.0
  %562 = vmatprep.subr.mxu0 0.0
  %563 = vmatpush1.msra.mxu0 0.0
  %564 = vmatprep.subr.mxu0 0.0
  %565 = vmatpush1.msra.mxu0 0.0
  %566 = vmatprep.subr.mxu0 0.0
  %567 = vmatpush1.msra.mxu0 0.0
  %568 = vmatprep.subr.mxu0 0.0
  %569 = vmatpush1.msra.mxu0 0.0
  %570 = vmatprep.subr.mxu0 0.0
  %571 = vmatpush1.msra.mxu0 0.0
  %572 = vmatprep.subr.mxu0 0.0
  %573 = vmatpush1.msra.mxu0 0.0
  %574 = vmatprep.subr.mxu0 0.0
  %575 = vmatpush1.msra.mxu0 0.0
  %576 = vmatprep.mubr.f32.mxu0 0.0
  %577 = vmatmul.mubr.f32.gmra.mrb[0].mxu0 %v510
  %v578 = vpop.f32.mrb[0].mxu0
  %v579 = vadd.f32 %v199, %v578
  %v580 = vpop.f32.mrb[0].mxu0
  %581 = vdwg.mxu0
  %v582 = vxor.u32 %v579, 2147483648
  %v583 = vmul.f32 %v582, 1.442695
  %v584 = vpow.pop %v583
  %v585 = vadd.f32 %v584, 1.0
  %v586 = vrcp.pop %v585
  %v587 = vmul.f32 1.0, %v586
  %v588 = vtanh.pop %v579
  %v589 = vmul.f32 %v587, %v396
  %591 = vrot.lane.b32.xlu0 %v588, 32
  %v592 = vpop.permute.xlu0 %591
  %v594 = vmul.f32 %v587, %v592
  %596 = vrot.lane.b32.xlu0 %v594, 32
  %v597 = vpop.permute.xlu0 %596
  %v599 = vadd.f32 %v589, %v597
  %v600 = vtanh.pop %v599
  %602 = vrot.lane.b32.xlu0 %v600, 32
  %v603 = vpop.permute.xlu0 %602
  %v605 = vmul.f32 %v587, %v603
  %v606 = vsel %vm201, %v502, 0
  %608 = vmatprep.subr.mxu0 0.0
  %609 = vmatpush1.msra.mxu0 %v182
  %610 = vmatprep.subr.mxu0 0.0
  %611 = vmatpush1.msra.mxu0 %v183
  %612 = vmatprep.subr.mxu0 0.0
  %613 = vmatpush1.msra.mxu0 %v184
  %614 = vmatprep.subr.mxu0 0.0
  %615 = vmatpush1.msra.mxu0 %v185
  %616 = vmatprep.subr.mxu0 0.0
  %617 = vmatpush1.msra.mxu0 0.0
  %618 = vmatprep.subr.mxu0 0.0
  %619 = vmatpush1.msra.mxu0 0.0
  %620 = vmatprep.subr.mxu0 0.0
  %621 = vmatpush1.msra.mxu0 0.0
  %622 = vmatprep.subr.mxu0 0.0
  %623 = vmatpush1.msra.mxu0 0.0
  %624 = vmatprep.subr.mxu0 0.0
  %625 = vmatpush1.msra.mxu0 0.0
  %626 = vmatprep.subr.mxu0 0.0
  %627 = vmatpush1.msra.mxu0 0.0
  %628 = vmatprep.subr.mxu0 0.0
  %629 = vmatpush1.msra.mxu0 0.0
  %630 = vmatprep.subr.mxu0 0.0
  %631 = vmatpush1.msra.mxu0 0.0
  %632 = vmatprep.subr.mxu0 0.0
  %633 = vmatpush1.msra.mxu0 0.0
  %634 = vmatprep.subr.mxu0 0.0
  %635 = vmatpush1.msra.mxu0 0.0
  %636 = vmatprep.subr.mxu0 0.0
  %637 = vmatpush1.msra.mxu0 0.0
  %638 = vmatprep.subr.mxu0 0.0
  %639 = vmatpush1.msra.mxu0 0.0
  %640 = vmatprep.subr.mxu0 0.0
  %641 = vmatpush1.msra.mxu0 0.0
  %642 = vmatprep.subr.mxu0 0.0
  %643 = vmatpush1.msra.mxu0 0.0
  %644 = vmatprep.subr.mxu0 0.0
  %645 = vmatpush1.msra.mxu0 0.0
  %646 = vmatprep.subr.mxu0 0.0
  %647 = vmatpush1.msra.mxu0 0.0
  %648 = vmatprep.subr.mxu0 0.0
  %649 = vmatpush1.msra.mxu0 0.0
  %650 = vmatprep.subr.mxu0 0.0
  %651 = vmatpush1.msra.mxu0 0.0
  %652 = vmatprep.subr.mxu0 0.0
  %653 = vmatpush1.msra.mxu0 0.0
  %654 = vmatprep.subr.mxu0 0.0
  %655 = vmatpush1.msra.mxu0 0.0
  %656 = vmatprep.subr.mxu0 0.0
  %657 = vmatpush1.msra.mxu0 0.0
  %658 = vmatprep.subr.mxu0 0.0
  %659 = vmatpush1.msra.mxu0 0.0
  %660 = vmatprep.subr.mxu0 0.0
  %661 = vmatpush1.msra.mxu0 0.0
  %662 = vmatprep.subr.mxu0 0.0
  %663 = vmatpush1.msra.mxu0 0.0
  %664 = vmatprep.subr.mxu0 0.0
  %665 = vmatpush1.msra.mxu0 0.0
  %666 = vmatprep.subr.mxu0 0.0
  %667 = vmatpush1.msra.mxu0 0.0
  %668 = vmatprep.subr.mxu0 0.0
  %669 = vmatpush1.msra.mxu0 0.0
  %670 = vmatprep.subr.mxu0 0.0
  %671 = vmatpush1.msra.mxu0 0.0
  %672 = vmatprep.mubr.f32.mxu0 0.0
  %673 = vmatmul.mubr.f32.gmra.mrb[0].mxu0 %v606
  %v674 = vpop.f32.mrb[0].mxu0
  %v675 = vadd.f32 0.0, %v674
  %v676 = vpop.f32.mrb[0].mxu0
  %677 = vdwg.mxu0
  %v678 = vadd.f32 %v154, %v675
  %v679 = vxor.u32 %v678, 2147483648
  %v680 = vmul.f32 %v679, 1.442695
  %v681 = vpow.pop %v680
  %v682 = vadd.f32 %v681, 1.0
  %v683 = vrcp.pop %v682
  %v684 = vmul.f32 1.0, %v683
  %v685 = vtanh.pop %v678
  %v686 = vmul.f32 %v684, %v493
  %688 = vrot.lane.b32.xlu0 %v685, 32
  %v689 = vpop.permute.xlu0 %688
  %v691 = vmul.f32 %v684, %v689
  %693 = vrot.lane.b32.xlu0 %v691, 32
  %v694 = vpop.permute.xlu0 %693
  %v696 = vadd.f32 %v686, %v694
  %v697 = vtanh.pop %v696
  %699 = vrot.lane.b32.xlu0 %v697, 32
  %v700 = vpop.permute.xlu0 %699
  %v702 = vmul.f32 %v684, %v700
  %704 = vrot.lane.b32.xlu0 %v702, 64
  %v705 = vpop.permute.xlu0 %704
  %708 = vrot.lane.b32.xlu0 %v605, 96
  %v709 = vpop.permute.xlu0 %708
  %v711 = vsel %vm201, %v705, %v709
  %v713 = vsel %vm305, %v711, 0
  %715 = vmatprep.subr.mxu0 0.0
  %716 = vmatpush1.msra.mxu0 %v186
  %717 = vmatprep.subr.mxu0 0.0
  %718 = vmatpush1.msra.mxu0 %v187
  %719 = vmatprep.subr.mxu0 0.0
  %720 = vmatpush1.msra.mxu0 %v188
  %721 = vmatprep.subr.mxu0 0.0
  %722 = vmatpush1.msra.mxu0 %v189
  %723 = vmatprep.subr.mxu0 0.0
  %724 = vmatpush1.msra.mxu0 %v190
  %725 = vmatprep.subr.mxu0 0.0
  %726 = vmatpush1.msra.mxu0 %v191
  %727 = vmatprep.subr.mxu0 0.0
  %728 = vmatpush1.msra.mxu0 %v192
  %729 = vmatprep.subr.mxu0 0.0
  %730 = vmatpush1.msra.mxu0 %v193
  %731 = vmatprep.subr.mxu0 0.0
  %732 = vmatpush1.msra.mxu0 0.0
  %733 = vmatprep.subr.mxu0 0.0
  %734 = vmatpush1.msra.mxu0 0.0
  %735 = vmatprep.subr.mxu0 0.0
  %736 = vmatpush1.msra.mxu0 0.0
  %737 = vmatprep.subr.mxu0 0.0
  %738 = vmatpush1.msra.mxu0 0.0
  %739 = vmatprep.subr.mxu0 0.0
  %740 = vmatpush1.msra.mxu0 0.0
  %741 = vmatprep.subr.mxu0 0.0
  %742 = vmatpush1.msra.mxu0 0.0
  %743 = vmatprep.subr.mxu0 0.0
  %744 = vmatpush1.msra.mxu0 0.0
  %745 = vmatprep.subr.mxu0 0.0
  %746 = vmatpush1.msra.mxu0 0.0
  %747 = vmatprep.subr.mxu0 0.0
  %748 = vmatpush1.msra.mxu0 0.0
  %749 = vmatprep.subr.mxu0 0.0
  %750 = vmatpush1.msra.mxu0 0.0
  %751 = vmatprep.subr.mxu0 0.0
  %752 = vmatpush1.msra.mxu0 0.0
  %753 = vmatprep.subr.mxu0 0.0
  %754 = vmatpush1.msra.mxu0 0.0
  %755 = vmatprep.subr.mxu0 0.0
  %756 = vmatpush1.msra.mxu0 0.0
  %757 = vmatprep.subr.mxu0 0.0
  %758 = vmatpush1.msra.mxu0 0.0
  %759 = vmatprep.subr.mxu0 0.0
  %760 = vmatpush1.msra.mxu0 0.0
  %761 = vmatprep.subr.mxu0 0.0
  %762 = vmatpush1.msra.mxu0 0.0
  %763 = vmatprep.subr.mxu0 0.0
  %764 = vmatpush1.msra.mxu0 0.0
  %765 = vmatprep.subr.mxu0 0.0
  %766 = vmatpush1.msra.mxu0 0.0
  %767 = vmatprep.subr.mxu0 0.0
  %768 = vmatpush1.msra.mxu0 0.0
  %769 = vmatprep.subr.mxu0 0.0
  %770 = vmatpush1.msra.mxu0 0.0
  %771 = vmatprep.subr.mxu0 0.0
  %772 = vmatpush1.msra.mxu0 0.0
  %773 = vmatprep.subr.mxu0 0.0
  %774 = vmatpush1.msra.mxu0 0.0
  %775 = vmatprep.subr.mxu0 0.0
  %776 = vmatpush1.msra.mxu0 0.0
  %777 = vmatprep.subr.mxu0 0.0
  %778 = vmatpush1.msra.mxu0 0.0
  %779 = vmatprep.mubr.f32.mxu0 0.0
  %780 = vmatmul.mubr.f32.gmra.mrb[0].mxu0 %v713
  %v781 = vpop.f32.mrb[0].mxu0
  %v782 = vadd.f32 %v199, %v781
  %v783 = vpop.f32.mrb[0].mxu0
  %784 = vdwg.mxu0
  %v785 = vxor.u32 %v782, 2147483648
  %v786 = vmul.f32 %v785, 1.442695
  %v787 = vpow.pop %v786
  %v788 = vadd.f32 %v787, 1.0
  %v789 = vrcp.pop %v788
  %v790 = vmul.f32 1.0, %v789
  %v791 = vtanh.pop %v782
  %v792 = vmul.f32 %v790, %v599
  %794 = vrot.lane.b32.xlu0 %v791, 32
  %v795 = vpop.permute.xlu0 %794
  %v797 = vmul.f32 %v790, %v795
  %799 = vrot.lane.b32.xlu0 %v797, 32
  %v800 = vpop.permute.xlu0 %799
  %v802 = vadd.f32 %v792, %v800
  %v803 = vtanh.pop %v802
  %805 = vrot.lane.b32.xlu0 %v803, 32
  %v806 = vpop.permute.xlu0 %805
  %v808 = vmul.f32 %v790, %v806
  %v809 = vsel %vm201, %v705, 0
  %811 = vmatprep.subr.mxu0 0.0
  %812 = vmatpush1.msra.mxu0 %v182
  %813 = vmatprep.subr.mxu0 0.0
  %814 = vmatpush1.msra.mxu0 %v183
  %815 = vmatprep.subr.mxu0 0.0
  %816 = vmatpush1.msra.mxu0 %v184
  %817 = vmatprep.subr.mxu0 0.0
  %818 = vmatpush1.msra.mxu0 %v185
  %819 = vmatprep.subr.mxu0 0.0
  %820 = vmatpush1.msra.mxu0 0.0
  %821 = vmatprep.subr.mxu0 0.0
  %822 = vmatpush1.msra.mxu0 0.0
  %823 = vmatprep.subr.mxu0 0.0
  %824 = vmatpush1.msra.mxu0 0.0
  %825 = vmatprep.subr.mxu0 0.0
  %826 = vmatpush1.msra.mxu0 0.0
  %827 = vmatprep.subr.mxu0 0.0
  %828 = vmatpush1.msra.mxu0 0.0
  %829 = vmatprep.subr.mxu0 0.0
  %830 = vmatpush1.msra.mxu0 0.0
  %831 = vmatprep.subr.mxu0 0.0
  %832 = vmatpush1.msra.mxu0 0.0
  %833 = vmatprep.subr.mxu0 0.0
  %834 = vmatpush1.msra.mxu0 0.0
  %835 = vmatprep.subr.mxu0 0.0
  %836 = vmatpush1.msra.mxu0 0.0
  %837 = vmatprep.subr.mxu0 0.0
  %838 = vmatpush1.msra.mxu0 0.0
  %839 = vmatprep.subr.mxu0 0.0
  %840 = vmatpush1.msra.mxu0 0.0
  %841 = vmatprep.subr.mxu0 0.0
  %842 = vmatpush1.msra.mxu0 0.0
  %843 = vmatprep.subr.mxu0 0.0
  %844 = vmatpush1.msra.mxu0 0.0
  %845 = vmatprep.subr.mxu0 0.0
  %846 = vmatpush1.msra.mxu0 0.0
  %847 = vmatprep.subr.mxu0 0.0
  %848 = vmatpush1.msra.mxu0 0.0
  %849 = vmatprep.subr.mxu0 0.0
  %850 = vmatpush1.msra.mxu0 0.0
  %851 = vmatprep.subr.mxu0 0.0
  %852 = vmatpush1.msra.mxu0 0.0
  %853 = vmatprep.subr.mxu0 0.0
  %854 = vmatpush1.msra.mxu0 0.0
  %855 = vmatprep.subr.mxu0 0.0
  %856 = vmatpush1.msra.mxu0 0.0
  %857 = vmatprep.subr.mxu0 0.0
  %858 = vmatpush1.msra.mxu0 0.0
  %859 = vmatprep.subr.mxu0 0.0
  %860 = vmatpush1.msra.mxu0 0.0
  %861 = vmatprep.subr.mxu0 0.0
  %862 = vmatpush1.msra.mxu0 0.0
  %863 = vmatprep.subr.mxu0 0.0
  %864 = vmatpush1.msra.mxu0 0.0
  %865 = vmatprep.subr.mxu0 0.0
  %866 = vmatpush1.msra.mxu0 0.0
  %867 = vmatprep.subr.mxu0 0.0
  %868 = vmatpush1.msra.mxu0 0.0
  %869 = vmatprep.subr.mxu0 0.0
  %870 = vmatpush1.msra.mxu0 0.0
  %871 = vmatprep.subr.mxu0 0.0
  %872 = vmatpush1.msra.mxu0 0.0
  %873 = vmatprep.subr.mxu0 0.0
  %874 = vmatpush1.msra.mxu0 0.0
  %875 = vmatprep.mubr.f32.mxu0 0.0
  %876 = vmatmul.mubr.f32.gmra.mrb[0].mxu0 %v809
  %v877 = vpop.f32.mrb[0].mxu0
  %v878 = vadd.f32 0.0, %v877
  %v879 = vpop.f32.mrb[0].mxu0
  %880 = vdwg.mxu0
  %v881 = vadd.f32 %v159, %v878
  %v882 = vxor.u32 %v881, 2147483648
  %v883 = vmul.f32 %v882, 1.442695
  %v884 = vpow.pop %v883
  %v885 = vadd.f32 %v884, 1.0
  %v886 = vrcp.pop %v885
  %v887 = vmul.f32 1.0, %v886
  %v888 = vtanh.pop %v881
  %v889 = vmul.f32 %v887, %v696
  %891 = vrot.lane.b32.xlu0 %v888, 32
  %v892 = vpop.permute.xlu0 %891
  %v894 = vmul.f32 %v887, %v892
  %896 = vrot.lane.b32.xlu0 %v894, 32
  %v897 = vpop.permute.xlu0 %896
  %v899 = vadd.f32 %v889, %v897
  %v900 = vtanh.pop %v899
  %902 = vrot.lane.b32.xlu0 %v900, 32
  %v903 = vpop.permute.xlu0 %902
  %v905 = vmul.f32 %v887, %v903
  %907 = vrot.lane.b32.xlu0 %v905, 64
  %v908 = vpop.permute.xlu0 %907
  %911 = vrot.lane.b32.xlu0 %v808, 96
  %v912 = vpop.permute.xlu0 %911
  %v914 = vsel %vm201, %v908, %v912
  %v916 = vsel %vm305, %v914, 0
  %918 = vmatprep.subr.mxu0 0.0
  %919 = vmatpush1.msra.mxu0 %v186
  %920 = vmatprep.subr.mxu0 0.0
  %921 = vmatpush1.msra.mxu0 %v187
  %922 = vmatprep.subr.mxu0 0.0
  %923 = vmatpush1.msra.mxu0 %v188
  %924 = vmatprep.subr.mxu0 0.0
  %925 = vmatpush1.msra.mxu0 %v189
  %926 = vmatprep.subr.mxu0 0.0
  %927 = vmatpush1.msra.mxu0 %v190
  %928 = vmatprep.subr.mxu0 0.0
  %929 = vmatpush1.msra.mxu0 %v191
  %930 = vmatprep.subr.mxu0 0.0
  %931 = vmatpush1.msra.mxu0 %v192
  %932 = vmatprep.subr.mxu0 0.0
  %933 = vmatpush1.msra.mxu0 %v193
  %934 = vmatprep.subr.mxu0 0.0
  %935 = vmatpush1.msra.mxu0 0.0
  %936 = vmatprep.subr.mxu0 0.0
  %937 = vmatpush1.msra.mxu0 0.0
  %938 = vmatprep.subr.mxu0 0.0
  %939 = vmatpush1.msra.mxu0 0.0
  %940 = vmatprep.subr.mxu0 0.0
  %941 = vmatpush1.msra.mxu0 0.0
  %942 = vmatprep.subr.mxu0 0.0
  %943 = vmatpush1.msra.mxu0 0.0
  %944 = vmatprep.subr.mxu0 0.0
  %945 = vmatpush1.msra.mxu0 0.0
  %946 = vmatprep.subr.mxu0 0.0
  %947 = vmatpush1.msra.mxu0 0.0
  %948 = vmatprep.subr.mxu0 0.0
  %949 = vmatpush1.msra.mxu0 0.0
  %950 = vmatprep.subr.mxu0 0.0
  %951 = vmatpush1.msra.mxu0 0.0
  %952 = vmatprep.subr.mxu0 0.0
  %953 = vmatpush1.msra.mxu0 0.0
  %954 = vmatprep.subr.mxu0 0.0
  %955 = vmatpush1.msra.mxu0 0.0
  %956 = vmatprep.subr.mxu0 0.0
  %957 = vmatpush1.msra.mxu0 0.0
  %958 = vmatprep.subr.mxu0 0.0
  %959 = vmatpush1.msra.mxu0 0.0
  %960 = vmatprep.subr.mxu0 0.0
  %961 = vmatpush1.msra.mxu0 0.0
  %962 = vmatprep.subr.mxu0 0.0
  %963 = vmatpush1.msra.mxu0 0.0
  %964 = vmatprep.subr.mxu0 0.0
  %965 = vmatpush1.msra.mxu0 0.0
  %966 = vmatprep.subr.mxu0 0.0
  %967 = vmatpush1.msra.mxu0 0.0
  %968 = vmatprep.subr.mxu0 0.0
  %969 = vmatpush1.msra.mxu0 0.0
  %970 = vmatprep.subr.mxu0 0.0
  %971 = vmatpush1.msra.mxu0 0.0
  %972 = vmatprep.subr.mxu0 0.0
  %973 = vmatpush1.msra.mxu0 0.0
  %974 = vmatprep.subr.mxu0 0.0
  %975 = vmatpush1.msra.mxu0 0.0
  %976 = vmatprep.subr.mxu0 0.0
  %977 = vmatpush1.msra.mxu0 0.0
  %978 = vmatprep.subr.mxu0 0.0
  %979 = vmatpush1.msra.mxu0 0.0
  %980 = vmatprep.subr.mxu0 0.0
  %981 = vmatpush1.msra.mxu0 0.0
  %982 = vmatprep.mubr.f32.mxu0 0.0
  %983 = vmatmul.mubr.f32.gmra.mrb[0].mxu0 %v916
  %v984 = vpop.f32.mrb[0].mxu0
  %v985 = vadd.f32 %v199, %v984
  %v986 = vpop.f32.mrb[0].mxu0
  %987 = vdwg.mxu0
  %v988 = vxor.u32 %v985, 2147483648
  %v989 = vmul.f32 %v988, 1.442695
  %v990 = vpow.pop %v989
  %v991 = vadd.f32 %v990, 1.0
  %v992 = vrcp.pop %v991
  %v993 = vmul.f32 1.0, %v992
  %v994 = vtanh.pop %v985
  %v995 = vmul.f32 %v993, %v802
  %997 = vrot.lane.b32.xlu0 %v994, 32
  %v998 = vpop.permute.xlu0 %997
  %v1000 = vmul.f32 %v993, %v998
  %1002 = vrot.lane.b32.xlu0 %v1000, 32
  %v1003 = vpop.permute.xlu0 %1002
  %v1005 = vadd.f32 %v995, %v1003
  %v1006 = vtanh.pop %v1005
  %1008 = vrot.lane.b32.xlu0 %v1006, 32
  %v1009 = vpop.permute.xlu0 %1008
  %v1011 = vmul.f32 %v993, %v1009
  %v1012 = vsel %vm201, %v908, 0
  %1014 = vmatprep.subr.mxu0 0.0
  %1015 = vmatpush1.msra.mxu0 %v182
  %1016 = vmatprep.subr.mxu0 0.0
  %1017 = vmatpush1.msra.mxu0 %v183
  %1018 = vmatprep.subr.mxu0 0.0
  %1019 = vmatpush1.msra.mxu0 %v184
  %1020 = vmatprep.subr.mxu0 0.0
  %1021 = vmatpush1.msra.mxu0 %v185
  %1022 = vmatprep.subr.mxu0 0.0
  %1023 = vmatpush1.msra.mxu0 0.0
  %1024 = vmatprep.subr.mxu0 0.0
  %1025 = vmatpush1.msra.mxu0 0.0
  %1026 = vmatprep.subr.mxu0 0.0
  %1027 = vmatpush1.msra.mxu0 0.0
  %1028 = vmatprep.subr.mxu0 0.0
  %1029 = vmatpush1.msra.mxu0 0.0
  %1030 = vmatprep.subr.mxu0 0.0
  %1031 = vmatpush1.msra.mxu0 0.0
  %1032 = vmatprep.subr.mxu0 0.0
  %1033 = vmatpush1.msra.mxu0 0.0
  %1034 = vmatprep.subr.mxu0 0.0
  %1035 = vmatpush1.msra.mxu0 0.0
  %1036 = vmatprep.subr.mxu0 0.0
  %1037 = vmatpush1.msra.mxu0 0.0
  %1038 = vmatprep.subr.mxu0 0.0
  %1039 = vmatpush1.msra.mxu0 0.0
  %1040 = vmatprep.subr.mxu0 0.0
  %1041 = vmatpush1.msra.mxu0 0.0
  %1042 = vmatprep.subr.mxu0 0.0
  %1043 = vmatpush1.msra.mxu0 0.0
  %1044 = vmatprep.subr.mxu0 0.0
  %1045 = vmatpush1.msra.mxu0 0.0
  %1046 = vmatprep.subr.mxu0 0.0
  %1047 = vmatpush1.msra.mxu0 0.0
  %1048 = vmatprep.subr.mxu0 0.0
  %1049 = vmatpush1.msra.mxu0 0.0
  %1050 = vmatprep.subr.mxu0 0.0
  %1051 = vmatpush1.msra.mxu0 0.0
  %1052 = vmatprep.subr.mxu0 0.0
  %1053 = vmatpush1.msra.mxu0 0.0
  %1054 = vmatprep.subr.mxu0 0.0
  %1055 = vmatpush1.msra.mxu0 0.0
  %1056 = vmatprep.subr.mxu0 0.0
  %1057 = vmatpush1.msra.mxu0 0.0
  %1058 = vmatprep.subr.mxu0 0.0
  %1059 = vmatpush1.msra.mxu0 0.0
  %1060 = vmatprep.subr.mxu0 0.0
  %1061 = vmatpush1.msra.mxu0 0.0
  %1062 = vmatprep.subr.mxu0 0.0
  %1063 = vmatpush1.msra.mxu0 0.0
  %1064 = vmatprep.subr.mxu0 0.0
  %1065 = vmatpush1.msra.mxu0 0.0
  %1066 = vmatprep.subr.mxu0 0.0
  %1067 = vmatpush1.msra.mxu0 0.0
  %1068 = vmatprep.subr.mxu0 0.0
  %1069 = vmatpush1.msra.mxu0 0.0
  %1070 = vmatprep.subr.mxu0 0.0
  %1071 = vmatpush1.msra.mxu0 0.0
  %1072 = vmatprep.subr.mxu0 0.0
  %1073 = vmatpush1.msra.mxu0 0.0
  %1074 = vmatprep.subr.mxu0 0.0
  %1075 = vmatpush1.msra.mxu0 0.0
  %1076 = vmatprep.subr.mxu0 0.0
  %1077 = vmatpush1.msra.mxu0 0.0
  %1078 = vmatprep.mubr.f32.mxu0 0.0
  %1079 = vmatmul.mubr.f32.gmra.mrb[0].mxu0 %v1012
  %v1080 = vpop.f32.mrb[0].mxu0
  %v1081 = vadd.f32 0.0, %v1080
  %v1082 = vpop.f32.mrb[0].mxu0
  %1083 = vdwg.mxu0
  %v1084 = vadd.f32 %v164, %v1081
  %v1085 = vxor.u32 %v1084, 2147483648
  %v1086 = vmul.f32 %v1085, 1.442695
  %v1087 = vpow.pop %v1086
  %v1088 = vadd.f32 %v1087, 1.0
  %v1089 = vrcp.pop %v1088
  %v1090 = vmul.f32 1.0, %v1089
  %v1091 = vtanh.pop %v1084
  %v1092 = vmul.f32 %v1090, %v899
  %1094 = vrot.lane.b32.xlu0 %v1091, 32
  %v1095 = vpop.permute.xlu0 %1094
  %v1097 = vmul.f32 %v1090, %v1095
  %1099 = vrot.lane.b32.xlu0 %v1097, 32
  %v1100 = vpop.permute.xlu0 %1099
  %v1102 = vadd.f32 %v1092, %v1100
  %v1103 = vtanh.pop %v1102
  %1105 = vrot.lane.b32.xlu0 %v1103, 32
  %v1106 = vpop.permute.xlu0 %1105
  %v1108 = vmul.f32 %v1090, %v1106
  %1110 = vrot.lane.b32.xlu0 %v1108, 64
  %v1111 = vpop.permute.xlu0 %1110
  %1114 = vrot.lane.b32.xlu0 %v1011, 96
  %v1115 = vpop.permute.xlu0 %1114
  %v1117 = vsel %vm201, %v1111, %v1115
  %v1119 = vsel %vm305, %v1117, 0
  %1121 = vmatprep.subr.mxu0 0.0
  %1122 = vmatpush1.msra.mxu0 %v186
  %1123 = vmatprep.subr.mxu0 0.0
  %1124 = vmatpush1.msra.mxu0 %v187
  %1125 = vmatprep.subr.mxu0 0.0
  %1126 = vmatpush1.msra.mxu0 %v188
  %1127 = vmatprep.subr.mxu0 0.0
  %1128 = vmatpush1.msra.mxu0 %v189
  %1129 = vmatprep.subr.mxu0 0.0
  %1130 = vmatpush1.msra.mxu0 %v190
  %1131 = vmatprep.subr.mxu0 0.0
  %1132 = vmatpush1.msra.mxu0 %v191
  %1133 = vmatprep.subr.mxu0 0.0
  %1134 = vmatpush1.msra.mxu0 %v192
  %1135 = vmatprep.subr.mxu0 0.0
  %1136 = vmatpush1.msra.mxu0 %v193
  %1137 = vmatprep.subr.mxu0 0.0
  %1138 = vmatpush1.msra.mxu0 0.0
  %1139 = vmatprep.subr.mxu0 0.0
  %1140 = vmatpush1.msra.mxu0 0.0
  %1141 = vmatprep.subr.mxu0 0.0
  %1142 = vmatpush1.msra.mxu0 0.0
  %1143 = vmatprep.subr.mxu0 0.0
  %1144 = vmatpush1.msra.mxu0 0.0
  %1145 = vmatprep.subr.mxu0 0.0
  %1146 = vmatpush1.msra.mxu0 0.0
  %1147 = vmatprep.subr.mxu0 0.0
  %1148 = vmatpush1.msra.mxu0 0.0
  %1149 = vmatprep.subr.mxu0 0.0
  %1150 = vmatpush1.msra.mxu0 0.0
  %1151 = vmatprep.subr.mxu0 0.0
  %1152 = vmatpush1.msra.mxu0 0.0
  %1153 = vmatprep.subr.mxu0 0.0
  %1154 = vmatpush1.msra.mxu0 0.0
  %1155 = vmatprep.subr.mxu0 0.0
  %1156 = vmatpush1.msra.mxu0 0.0
  %1157 = vmatprep.subr.mxu0 0.0
  %1158 = vmatpush1.msra.mxu0 0.0
  %1159 = vmatprep.subr.mxu0 0.0
  %1160 = vmatpush1.msra.mxu0 0.0
  %1161 = vmatprep.subr.mxu0 0.0
  %1162 = vmatpush1.msra.mxu0 0.0
  %1163 = vmatprep.subr.mxu0 0.0
  %1164 = vmatpush1.msra.mxu0 0.0
  %1165 = vmatprep.subr.mxu0 0.0
  %1166 = vmatpush1.msra.mxu0 0.0
  %1167 = vmatprep.subr.mxu0 0.0
  %1168 = vmatpush1.msra.mxu0 0.0
  %1169 = vmatprep.subr.mxu0 0.0
  %1170 = vmatpush1.msra.mxu0 0.0
  %1171 = vmatprep.subr.mxu0 0.0
  %1172 = vmatpush1.msra.mxu0 0.0
  %1173 = vmatprep.subr.mxu0 0.0
  %1174 = vmatpush1.msra.mxu0 0.0
  %1175 = vmatprep.subr.mxu0 0.0
  %1176 = vmatpush1.msra.mxu0 0.0
  %1177 = vmatprep.subr.mxu0 0.0
  %1178 = vmatpush1.msra.mxu0 0.0
  %1179 = vmatprep.subr.mxu0 0.0
  %1180 = vmatpush1.msra.mxu0 0.0
  %1181 = vmatprep.subr.mxu0 0.0
  %1182 = vmatpush1.msra.mxu0 0.0
  %1183 = vmatprep.subr.mxu0 0.0
  %1184 = vmatpush1.msra.mxu0 0.0
  %1185 = vmatprep.mubr.f32.mxu0 0.0
  %1186 = vmatmul.mubr.f32.gmra.mrb[0].mxu0 %v1119
  %v1187 = vpop.f32.mrb[0].mxu0
  %v1188 = vadd.f32 %v199, %v1187
  %v1189 = vpop.f32.mrb[0].mxu0
  %1190 = vdwg.mxu0
  %v1191 = vxor.u32 %v1188, 2147483648
  %v1192 = vmul.f32 %v1191, 1.442695
  %v1193 = vpow.pop %v1192
  %v1194 = vadd.f32 %v1193, 1.0
  %v1195 = vrcp.pop %v1194
  %v1196 = vmul.f32 1.0, %v1195
  %v1197 = vtanh.pop %v1188
  %v1198 = vmul.f32 %v1196, %v1005
  %1200 = vrot.lane.b32.xlu0 %v1197, 32
  %v1201 = vpop.permute.xlu0 %1200
  %v1203 = vmul.f32 %v1196, %v1201
  %1205 = vrot.lane.b32.xlu0 %v1203, 32
  %v1206 = vpop.permute.xlu0 %1205
  %v1208 = vadd.f32 %v1198, %v1206
  %v1209 = vtanh.pop %v1208
  %1211 = vrot.lane.b32.xlu0 %v1209, 32
  %v1212 = vpop.permute.xlu0 %1211
  %v1214 = vmul.f32 %v1196, %v1212
  %v1215 = vsel %vm201, %v1111, 0
  %1217 = vmatprep.subr.mxu0 0.0
  %1218 = vmatpush1.msra.mxu0 %v182
  %1219 = vmatprep.subr.mxu0 0.0
  %1220 = vmatpush1.msra.mxu0 %v183
  %1221 = vmatprep.subr.mxu0 0.0
  %1222 = vmatpush1.msra.mxu0 %v184
  %1223 = vmatprep.subr.mxu0 0.0
  %1224 = vmatpush1.msra.mxu0 %v185
  %1225 = vmatprep.subr.mxu0 0.0
  %1226 = vmatpush1.msra.mxu0 0.0
  %1227 = vmatprep.subr.mxu0 0.0
  %1228 = vmatpush1.msra.mxu0 0.0
  %1229 = vmatprep.subr.mxu0 0.0
  %1230 = vmatpush1.msra.mxu0 0.0
  %1231 = vmatprep.subr.mxu0 0.0
  %1232 = vmatpush1.msra.mxu0 0.0
  %1233 = vmatprep.subr.mxu0 0.0
  %1234 = vmatpush1.msra.mxu0 0.0
  %1235 = vmatprep.subr.mxu0 0.0
  %1236 = vmatpush1.msra.mxu0 0.0
  %1237 = vmatprep.subr.mxu0 0.0
  %1238 = vmatpush1.msra.mxu0 0.0
  %1239 = vmatprep.subr.mxu0 0.0
  %1240 = vmatpush1.msra.mxu0 0.0
  %1241 = vmatprep.subr.mxu0 0.0
  %1242 = vmatpush1.msra.mxu0 0.0
  %1243 = vmatprep.subr.mxu0 0.0
  %1244 = vmatpush1.msra.mxu0 0.0
  %1245 = vmatprep.subr.mxu0 0.0
  %1246 = vmatpush1.msra.mxu0 0.0
  %1247 = vmatprep.subr.mxu0 0.0
  %1248 = vmatpush1.msra.mxu0 0.0
  %1249 = vmatprep.subr.mxu0 0.0
  %1250 = vmatpush1.msra.mxu0 0.0
  %1251 = vmatprep.subr.mxu0 0.0
  %1252 = vmatpush1.msra.mxu0 0.0
  %1253 = vmatprep.subr.mxu0 0.0
  %1254 = vmatpush1.msra.mxu0 0.0
  %1255 = vmatprep.subr.mxu0 0.0
  %1256 = vmatpush1.msra.mxu0 0.0
  %1257 = vmatprep.subr.mxu0 0.0
  %1258 = vmatpush1.msra.mxu0 0.0
  %1259 = vmatprep.subr.mxu0 0.0
  %1260 = vmatpush1.msra.mxu0 0.0
  %1261 = vmatprep.subr.mxu0 0.0
  %1262 = vmatpush1.msra.mxu0 0.0
  %1263 = vmatprep.subr.mxu0 0.0
  %1264 = vmatpush1.msra.mxu0 0.0
  %1265 = vmatprep.subr.mxu0 0.0
  %1266 = vmatpush1.msra.mxu0 0.0
  %1267 = vmatprep.subr.mxu0 0.0
  %1268 = vmatpush1.msra.mxu0 0.0
  %1269 = vmatprep.subr.mxu0 0.0
  %1270 = vmatpush1.msra.mxu0 0.0
  %1271 = vmatprep.subr.mxu0 0.0
  %1272 = vmatpush1.msra.mxu0 0.0
  %1273 = vmatprep.subr.mxu0 0.0
  %1274 = vmatpush1.msra.mxu0 0.0
  %1275 = vmatprep.subr.mxu0 0.0
  %1276 = vmatpush1.msra.mxu0 0.0
  %1277 = vmatprep.subr.mxu0 0.0
  %1278 = vmatpush1.msra.mxu0 0.0
  %1279 = vmatprep.subr.mxu0 0.0
  %1280 = vmatpush1.msra.mxu0 0.0
  %1281 = vmatprep.mubr.f32.mxu0 0.0
  %1282 = vmatmul.mubr.f32.gmra.mrb[0].mxu0 %v1215
  %v1283 = vpop.f32.mrb[0].mxu0
  %v1284 = vadd.f32 0.0, %v1283
  %v1285 = vpop.f32.mrb[0].mxu0
  %1286 = vdwg.mxu0
  %v1287 = vadd.f32 %v169, %v1284
  %v1288 = vxor.u32 %v1287, 2147483648
  %v1289 = vmul.f32 %v1288, 1.442695
  %v1290 = vpow.pop %v1289
  %v1291 = vadd.f32 %v1290, 1.0
  %v1292 = vrcp.pop %v1291
  %v1293 = vmul.f32 1.0, %v1292
  %v1294 = vtanh.pop %v1287
  %v1295 = vmul.f32 %v1293, %v1102
  %1297 = vrot.lane.b32.xlu0 %v1294, 32
  %v1298 = vpop.permute.xlu0 %1297
  %v1300 = vmul.f32 %v1293, %v1298
  %1302 = vrot.lane.b32.xlu0 %v1300, 32
  %v1303 = vpop.permute.xlu0 %1302
  %v1305 = vadd.f32 %v1295, %v1303
  %v1306 = vtanh.pop %v1305
  %1308 = vrot.lane.b32.xlu0 %v1306, 32
  %v1309 = vpop.permute.xlu0 %1308
  %v1311 = vmul.f32 %v1293, %v1309
  %1313 = vrot.lane.b32.xlu0 %v1311, 64
  %v1314 = vpop.permute.xlu0 %1313
  %1317 = vrot.lane.b32.xlu0 %v1214, 96
  %v1318 = vpop.permute.xlu0 %1317
  %v1320 = vsel %vm201, %v1314, %v1318
  %v1322 = vsel %vm305, %v1320, 0
  %1324 = vmatprep.subr.mxu0 0.0
  %1325 = vmatpush1.msra.mxu0 %v186
  %1326 = vmatprep.subr.mxu0 0.0
  %1327 = vmatpush1.msra.mxu0 %v187
  %1328 = vmatprep.subr.mxu0 0.0
  %1329 = vmatpush1.msra.mxu0 %v188
  %1330 = vmatprep.subr.mxu0 0.0
  %1331 = vmatpush1.msra.mxu0 %v189
  %1332 = vmatprep.subr.mxu0 0.0
  %1333 = vmatpush1.msra.mxu0 %v190
  %1334 = vmatprep.subr.mxu0 0.0
  %1335 = vmatpush1.msra.mxu0 %v191
  %1336 = vmatprep.subr.mxu0 0.0
  %1337 = vmatpush1.msra.mxu0 %v192
  %1338 = vmatprep.subr.mxu0 0.0
  %1339 = vmatpush1.msra.mxu0 %v193
  %1340 = vmatprep.subr.mxu0 0.0
  %1341 = vmatpush1.msra.mxu0 0.0
  %1342 = vmatprep.subr.mxu0 0.0
  %1343 = vmatpush1.msra.mxu0 0.0
  %1344 = vmatprep.subr.mxu0 0.0
  %1345 = vmatpush1.msra.mxu0 0.0
  %1346 = vmatprep.subr.mxu0 0.0
  %1347 = vmatpush1.msra.mxu0 0.0
  %1348 = vmatprep.subr.mxu0 0.0
  %1349 = vmatpush1.msra.mxu0 0.0
  %1350 = vmatprep.subr.mxu0 0.0
  %1351 = vmatpush1.msra.mxu0 0.0
  %1352 = vmatprep.subr.mxu0 0.0
  %1353 = vmatpush1.msra.mxu0 0.0
  %1354 = vmatprep.subr.mxu0 0.0
  %1355 = vmatpush1.msra.mxu0 0.0
  %1356 = vmatprep.subr.mxu0 0.0
  %1357 = vmatpush1.msra.mxu0 0.0
  %1358 = vmatprep.subr.mxu0 0.0
  %1359 = vmatpush1.msra.mxu0 0.0
  %1360 = vmatprep.subr.mxu0 0.0
  %1361 = vmatpush1.msra.mxu0 0.0
  %1362 = vmatprep.subr.mxu0 0.0
  %1363 = vmatpush1.msra.mxu0 0.0
  %1364 = vmatprep.subr.mxu0 0.0
  %1365 = vmatpush1.msra.mxu0 0.0
  %1366 = vmatprep.subr.mxu0 0.0
  %1367 = vmatpush1.msra.mxu0 0.0
  %1368 = vmatprep.subr.mxu0 0.0
  %1369 = vmatpush1.msra.mxu0 0.0
  %1370 = vmatprep.subr.mxu0 0.0
  %1371 = vmatpush1.msra.mxu0 0.0
  %1372 = vmatprep.subr.mxu0 0.0
  %1373 = vmatpush1.msra.mxu0 0.0
  %1374 = vmatprep.subr.mxu0 0.0
  %1375 = vmatpush1.msra.mxu0 0.0
  %1376 = vmatprep.subr.mxu0 0.0
  %1377 = vmatpush1.msra.mxu0 0.0
  %1378 = vmatprep.subr.mxu0 0.0
  %1379 = vmatpush1.msra.mxu0 0.0
  %1380 = vmatprep.subr.mxu0 0.0
  %1381 = vmatpush1.msra.mxu0 0.0
  %1382 = vmatprep.subr.mxu0 0.0
  %1383 = vmatpush1.msra.mxu0 0.0
  %1384 = vmatprep.subr.mxu0 0.0
  %1385 = vmatpush1.msra.mxu0 0.0
  %1386 = vmatprep.subr.mxu0 0.0
  %1387 = vmatpush1.msra.mxu0 0.0
  %1388 = vmatprep.mubr.f32.mxu0 0.0
  %1389 = vmatmul.mubr.f32.gmra.mrb[0].mxu0 %v1322
  %v1390 = vpop.f32.mrb[0].mxu0
  %v1391 = vadd.f32 %v199, %v1390
  %v1392 = vpop.f32.mrb[0].mxu0
  %1393 = vdwg.mxu0
  %v1394 = vxor.u32 %v1391, 2147483648
  %v1395 = vmul.f32 %v1394, 1.442695
  %v1396 = vpow.pop %v1395
  %v1397 = vadd.f32 %v1396, 1.0
  %v1398 = vrcp.pop %v1397
  %v1399 = vmul.f32 1.0, %v1398
  %v1400 = vtanh.pop %v1391
  %v1401 = vmul.f32 %v1399, %v1208
  %1403 = vrot.lane.b32.xlu0 %v1400, 32
  %v1404 = vpop.permute.xlu0 %1403
  %v1406 = vmul.f32 %v1399, %v1404
  %1408 = vrot.lane.b32.xlu0 %v1406, 32
  %v1409 = vpop.permute.xlu0 %1408
  %v1411 = vadd.f32 %v1401, %v1409
  %v1412 = vtanh.pop %v1411
  %1414 = vrot.lane.b32.xlu0 %v1412, 32
  %v1415 = vpop.permute.xlu0 %1414
  %v1417 = vmul.f32 %v1399, %v1415
  %v1418 = vsel %vm201, %v1314, 0
  %1420 = vmatprep.subr.mxu0 0.0
  %1421 = vmatpush1.msra.mxu0 %v182
  %1422 = vmatprep.subr.mxu0 0.0
  %1423 = vmatpush1.msra.mxu0 %v183
  %1424 = vmatprep.subr.mxu0 0.0
  %1425 = vmatpush1.msra.mxu0 %v184
  %1426 = vmatprep.subr.mxu0 0.0
  %1427 = vmatpush1.msra.mxu0 %v185
  %1428 = vmatprep.subr.mxu0 0.0
  %1429 = vmatpush1.msra.mxu0 0.0
  %1430 = vmatprep.subr.mxu0 0.0
  %1431 = vmatpush1.msra.mxu0 0.0
  %1432 = vmatprep.subr.mxu0 0.0
  %1433 = vmatpush1.msra.mxu0 0.0
  %1434 = vmatprep.subr.mxu0 0.0
  %1435 = vmatpush1.msra.mxu0 0.0
  %1436 = vmatprep.subr.mxu0 0.0
  %1437 = vmatpush1.msra.mxu0 0.0
  %1438 = vmatprep.subr.mxu0 0.0
  %1439 = vmatpush1.msra.mxu0 0.0
  %1440 = vmatprep.subr.mxu0 0.0
  %1441 = vmatpush1.msra.mxu0 0.0
  %1442 = vmatprep.subr.mxu0 0.0
  %1443 = vmatpush1.msra.mxu0 0.0
  %1444 = vmatprep.subr.mxu0 0.0
  %1445 = vmatpush1.msra.mxu0 0.0
  %1446 = vmatprep.subr.mxu0 0.0
  %1447 = vmatpush1.msra.mxu0 0.0
  %1448 = vmatprep.subr.mxu0 0.0
  %1449 = vmatpush1.msra.mxu0 0.0
  %1450 = vmatprep.subr.mxu0 0.0
  %1451 = vmatpush1.msra.mxu0 0.0
  %1452 = vmatprep.subr.mxu0 0.0
  %1453 = vmatpush1.msra.mxu0 0.0
  %1454 = vmatprep.subr.mxu0 0.0
  %1455 = vmatpush1.msra.mxu0 0.0
  %1456 = vmatprep.subr.mxu0 0.0
  %1457 = vmatpush1.msra.mxu0 0.0
  %1458 = vmatprep.subr.mxu0 0.0
  %1459 = vmatpush1.msra.mxu0 0.0
  %1460 = vmatprep.subr.mxu0 0.0
  %1461 = vmatpush1.msra.mxu0 0.0
  %1462 = vmatprep.subr.mxu0 0.0
  %1463 = vmatpush1.msra.mxu0 0.0
  %1464 = vmatprep.subr.mxu0 0.0
  %1465 = vmatpush1.msra.mxu0 0.0
  %1466 = vmatprep.subr.mxu0 0.0
  %1467 = vmatpush1.msra.mxu0 0.0
  %1468 = vmatprep.subr.mxu0 0.0
  %1469 = vmatpush1.msra.mxu0 0.0
  %1470 = vmatprep.subr.mxu0 0.0
  %1471 = vmatpush1.msra.mxu0 0.0
  %1472 = vmatprep.subr.mxu0 0.0
  %1473 = vmatpush1.msra.mxu0 0.0
  %1474 = vmatprep.subr.mxu0 0.0
  %1475 = vmatpush1.msra.mxu0 0.0
  %1476 = vmatprep.subr.mxu0 0.0
  %1477 = vmatpush1.msra.mxu0 0.0
  %1478 = vmatprep.subr.mxu0 0.0
  %1479 = vmatpush1.msra.mxu0 0.0
  %1480 = vmatprep.subr.mxu0 0.0
  %1481 = vmatpush1.msra.mxu0 0.0
  %1482 = vmatprep.subr.mxu0 0.0
  %1483 = vmatpush1.msra.mxu0 0.0
  %1484 = vmatprep.mubr.f32.mxu0 0.0
  %1485 = vmatmul.mubr.f32.gmra.mrb[0].mxu0 %v1418
  %v1486 = vpop.f32.mrb[0].mxu0
  %v1487 = vadd.f32 0.0, %v1486
  %v1488 = vpop.f32.mrb[0].mxu0
  %1489 = vdwg.mxu0
  %v1490 = vadd.f32 %v174, %v1487
  %v1491 = vxor.u32 %v1490, 2147483648
  %v1492 = vmul.f32 %v1491, 1.442695
  %v1493 = vpow.pop %v1492
  %v1494 = vadd.f32 %v1493, 1.0
  %v1495 = vrcp.pop %v1494
  %v1496 = vmul.f32 1.0, %v1495
  %v1497 = vtanh.pop %v1490
  %v1498 = vmul.f32 %v1496, %v1305
  %1500 = vrot.lane.b32.xlu0 %v1497, 32
  %v1501 = vpop.permute.xlu0 %1500
  %v1503 = vmul.f32 %v1496, %v1501
  %1505 = vrot.lane.b32.xlu0 %v1503, 32
  %v1506 = vpop.permute.xlu0 %1505
  %v1508 = vadd.f32 %v1498, %v1506
  %v1509 = vtanh.pop %v1508
  %1511 = vrot.lane.b32.xlu0 %v1509, 32
  %v1512 = vpop.permute.xlu0 %1511
  %v1514 = vmul.f32 %v1496, %v1512
  %1516 = vrot.lane.b32.xlu0 %v1514, 64
  %v1517 = vpop.permute.xlu0 %1516
  %1520 = vrot.lane.b32.xlu0 %v1417, 96
  %v1521 = vpop.permute.xlu0 %1520
  %v1523 = vsel %vm201, %v1517, %v1521
  %v1525 = vsel %vm305, %v1523, 0
  %1527 = vmatprep.subr.mxu0 0.0
  %1528 = vmatpush1.msra.mxu0 %v186
  %1529 = vmatprep.subr.mxu0 0.0
  %1530 = vmatpush1.msra.mxu0 %v187
  %1531 = vmatprep.subr.mxu0 0.0
  %1532 = vmatpush1.msra.mxu0 %v188
  %1533 = vmatprep.subr.mxu0 0.0
  %1534 = vmatpush1.msra.mxu0 %v189
  %1535 = vmatprep.subr.mxu0 0.0
  %1536 = vmatpush1.msra.mxu0 %v190
  %1537 = vmatprep.subr.mxu0 0.0
  %1538 = vmatpush1.msra.mxu0 %v191
  %1539 = vmatprep.subr.mxu0 0.0
  %1540 = vmatpush1.msra.mxu0 %v192
  %1541 = vmatprep.subr.mxu0 0.0
  %1542 = vmatpush1.msra.mxu0 %v193
  %1543 = vmatprep.subr.mxu0 0.0
  %1544 = vmatpush1.msra.mxu0 0.0
  %1545 = vmatprep.subr.mxu0 0.0
  %1546 = vmatpush1.msra.mxu0 0.0
  %1547 = vmatprep.subr.mxu0 0.0
  %1548 = vmatpush1.msra.mxu0 0.0
  %1549 = vmatprep.subr.mxu0 0.0
  %1550 = vmatpush1.msra.mxu0 0.0
  %1551 = vmatprep.subr.mxu0 0.0
  %1552 = vmatpush1.msra.mxu0 0.0
  %1553 = vmatprep.subr.mxu0 0.0
  %1554 = vmatpush1.msra.mxu0 0.0
  %1555 = vmatprep.subr.mxu0 0.0
  %1556 = vmatpush1.msra.mxu0 0.0
  %1557 = vmatprep.subr.mxu0 0.0
  %1558 = vmatpush1.msra.mxu0 0.0
  %1559 = vmatprep.subr.mxu0 0.0
  %1560 = vmatpush1.msra.mxu0 0.0
  %1561 = vmatprep.subr.mxu0 0.0
  %1562 = vmatpush1.msra.mxu0 0.0
  %1563 = vmatprep.subr.mxu0 0.0
  %1564 = vmatpush1.msra.mxu0 0.0
  %1565 = vmatprep.subr.mxu0 0.0
  %1566 = vmatpush1.msra.mxu0 0.0
  %1567 = vmatprep.subr.mxu0 0.0
  %1568 = vmatpush1.msra.mxu0 0.0
  %1569 = vmatprep.subr.mxu0 0.0
  %1570 = vmatpush1.msra.mxu0 0.0
  %1571 = vmatprep.subr.mxu0 0.0
  %1572 = vmatpush1.msra.mxu0 0.0
  %1573 = vmatprep.subr.mxu0 0.0
  %1574 = vmatpush1.msra.mxu0 0.0
  %1575 = vmatprep.subr.mxu0 0.0
  %1576 = vmatpush1.msra.mxu0 0.0
  %1577 = vmatprep.subr.mxu0 0.0
  %1578 = vmatpush1.msra.mxu0 0.0
  %1579 = vmatprep.subr.mxu0 0.0
  %1580 = vmatpush1.msra.mxu0 0.0
  %1581 = vmatprep.subr.mxu0 0.0
  %1582 = vmatpush1.msra.mxu0 0.0
  %1583 = vmatprep.subr.mxu0 0.0
  %1584 = vmatpush1.msra.mxu0 0.0
  %1585 = vmatprep.subr.mxu0 0.0
  %1586 = vmatpush1.msra.mxu0 0.0
  %1587 = vmatprep.subr.mxu0 0.0
  %1588 = vmatpush1.msra.mxu0 0.0
  %1589 = vmatprep.subr.mxu0 0.0
  %1590 = vmatpush1.msra.mxu0 0.0
  %1591 = vmatprep.mubr.f32.mxu0 0.0
  %1592 = vmatmul.mubr.f32.gmra.mrb[0].mxu0 %v1525
  %v1593 = vpop.f32.mrb[0].mxu0
  %v1594 = vadd.f32 %v199, %v1593
  %v1595 = vpop.f32.mrb[0].mxu0
  %1596 = vdwg.mxu0
  %v1597 = vxor.u32 %v1594, 2147483648
  %v1598 = vmul.f32 %v1597, 1.442695
  %v1599 = vpow.pop %v1598
  %v1600 = vadd.f32 %v1599, 1.0
  %v1601 = vrcp.pop %v1600
  %v1602 = vmul.f32 1.0, %v1601
  %v1603 = vtanh.pop %v1594
  %v1604 = vmul.f32 %v1602, %v1411
  %1606 = vrot.lane.b32.xlu0 %v1603, 32
  %v1607 = vpop.permute.xlu0 %1606
  %v1609 = vmul.f32 %v1602, %v1607
  %1611 = vrot.lane.b32.xlu0 %v1609, 32
  %v1612 = vpop.permute.xlu0 %1611
  %v1614 = vadd.f32 %v1604, %v1612
  %v1615 = vtanh.pop %v1614
  %1617 = vrot.lane.b32.xlu0 %v1615, 32
  %v1618 = vpop.permute.xlu0 %1617
  %v1620 = vmul.f32 %v1602, %v1618
  %v1621 = vsel %vm201, %v1517, 0
  %1623 = vmatprep.subr.mxu0 0.0
  %1624 = vmatpush1.msra.mxu0 %v182
  %1625 = vmatprep.subr.mxu0 0.0
  %1626 = vmatpush1.msra.mxu0 %v183
  %1627 = vmatprep.subr.mxu0 0.0
  %1628 = vmatpush1.msra.mxu0 %v184
  %1629 = vmatprep.subr.mxu0 0.0
  %1630 = vmatpush1.msra.mxu0 %v185
  %1631 = vmatprep.subr.mxu0 0.0
  %1632 = vmatpush1.msra.mxu0 0.0
  %1633 = vmatprep.subr.mxu0 0.0
  %1634 = vmatpush1.msra.mxu0 0.0
  %1635 = vmatprep.subr.mxu0 0.0
  %1636 = vmatpush1.msra.mxu0 0.0
  %1637 = vmatprep.subr.mxu0 0.0
  %1638 = vmatpush1.msra.mxu0 0.0
  %1639 = vmatprep.subr.mxu0 0.0
  %1640 = vmatpush1.msra.mxu0 0.0
  %1641 = vmatprep.subr.mxu0 0.0
  %1642 = vmatpush1.msra.mxu0 0.0
  %1643 = vmatprep.subr.mxu0 0.0
  %1644 = vmatpush1.msra.mxu0 0.0
  %1645 = vmatprep.subr.mxu0 0.0
  %1646 = vmatpush1.msra.mxu0 0.0
  %1647 = vmatprep.subr.mxu0 0.0
  %1648 = vmatpush1.msra.mxu0 0.0
  %1649 = vmatprep.subr.mxu0 0.0
  %1650 = vmatpush1.msra.mxu0 0.0
  %1651 = vmatprep.subr.mxu0 0.0
  %1652 = vmatpush1.msra.mxu0 0.0
  %1653 = vmatprep.subr.mxu0 0.0
  %1654 = vmatpush1.msra.mxu0 0.0
  %1655 = vmatprep.subr.mxu0 0.0
  %1656 = vmatpush1.msra.mxu0 0.0
  %1657 = vmatprep.subr.mxu0 0.0
  %1658 = vmatpush1.msra.mxu0 0.0
  %1659 = vmatprep.subr.mxu0 0.0
  %1660 = vmatpush1.msra.mxu0 0.0
  %1661 = vmatprep.subr.mxu0 0.0
  %1662 = vmatpush1.msra.mxu0 0.0
  %1663 = vmatprep.subr.mxu0 0.0
  %1664 = vmatpush1.msra.mxu0 0.0
  %1665 = vmatprep.subr.mxu0 0.0
  %1666 = vmatpush1.msra.mxu0 0.0
  %1667 = vmatprep.subr.mxu0 0.0
  %1668 = vmatpush1.msra.mxu0 0.0
  %1669 = vmatprep.subr.mxu0 0.0
  %1670 = vmatpush1.msra.mxu0 0.0
  %1671 = vmatprep.subr.mxu0 0.0
  %1672 = vmatpush1.msra.mxu0 0.0
  %1673 = vmatprep.subr.mxu0 0.0
  %1674 = vmatpush1.msra.mxu0 0.0
  %1675 = vmatprep.subr.mxu0 0.0
  %1676 = vmatpush1.msra.mxu0 0.0
  %1677 = vmatprep.subr.mxu0 0.0
  %1678 = vmatpush1.msra.mxu0 0.0
  %1679 = vmatprep.subr.mxu0 0.0
  %1680 = vmatpush1.msra.mxu0 0.0
  %1681 = vmatprep.subr.mxu0 0.0
  %1682 = vmatpush1.msra.mxu0 0.0
  %1683 = vmatprep.subr.mxu0 0.0
  %1684 = vmatpush1.msra.mxu0 0.0
  %1685 = vmatprep.subr.mxu0 0.0
  %1686 = vmatpush1.msra.mxu0 0.0
  %1687 = vmatprep.mubr.f32.mxu0 0.0
  %1688 = vmatmul.mubr.f32.gmra.mrb[0].mxu0 %v1621
  %v1689 = vpop.f32.mrb[0].mxu0
  %v1690 = vadd.f32 0.0, %v1689
  %v1691 = vpop.f32.mrb[0].mxu0
  %1692 = vdwg.mxu0
  %v1693 = vadd.f32 %v179, %v1690
  %v1694 = vxor.u32 %v1693, 2147483648
  %v1695 = vmul.f32 %v1694, 1.442695
  %v1696 = vpow.pop %v1695
  %v1697 = vadd.f32 %v1696, 1.0
  %v1698 = vrcp.pop %v1697
  %v1699 = vmul.f32 1.0, %v1698
  %v1700 = vtanh.pop %v1693
  %v1701 = vmul.f32 %v1699, %v1508
  %1703 = vrot.lane.b32.xlu0 %v1700, 32
  %v1704 = vpop.permute.xlu0 %1703
  %v1706 = vmul.f32 %v1699, %v1704
  %1708 = vrot.lane.b32.xlu0 %v1706, 32
  %v1709 = vpop.permute.xlu0 %1708
  %v1711 = vadd.f32 %v1701, %v1709
  %v1712 = vtanh.pop %v1711
  %1714 = vrot.lane.b32.xlu0 %v1712, 32
  %v1715 = vpop.permute.xlu0 %1714
  %v1717 = vmul.f32 %v1699, %v1715
  %1719 = vrot.lane.b32.xlu0 %v1717, 64
  %v1720 = vpop.permute.xlu0 %1719
  %1723 = vrot.lane.b32.xlu0 %v1620, 96
  %v1724 = vpop.permute.xlu0 %1723
  %v1726 = vsel %vm201, %v1720, %v1724
  %v1728 = vsel %vm305, %v1726, 0
  %1730 = vmatprep.subr.mxu0 0.0
  %1731 = vmatpush1.msra.mxu0 %v186
  %1732 = vmatprep.subr.mxu0 0.0
  %1733 = vmatpush1.msra.mxu0 %v187
  %1734 = vmatprep.subr.mxu0 0.0
  %1735 = vmatpush1.msra.mxu0 %v188
  %1736 = vmatprep.subr.mxu0 0.0
  %1737 = vmatpush1.msra.mxu0 %v189
  %1738 = vmatprep.subr.mxu0 0.0
  %1739 = vmatpush1.msra.mxu0 %v190
  %1740 = vmatprep.subr.mxu0 0.0
  %1741 = vmatpush1.msra.mxu0 %v191
  %1742 = vmatprep.subr.mxu0 0.0
  %1743 = vmatpush1.msra.mxu0 %v192
  %1744 = vmatprep.subr.mxu0 0.0
  %1745 = vmatpush1.msra.mxu0 %v193
  %1746 = vmatprep.subr.mxu0 0.0
  %1747 = vmatpush1.msra.mxu0 0.0
  %1748 = vmatprep.subr.mxu0 0.0
  %1749 = vmatpush1.msra.mxu0 0.0
  %1750 = vmatprep.subr.mxu0 0.0
  %1751 = vmatpush1.msra.mxu0 0.0
  %1752 = vmatprep.subr.mxu0 0.0
  %1753 = vmatpush1.msra.mxu0 0.0
  %1754 = vmatprep.subr.mxu0 0.0
  %1755 = vmatpush1.msra.mxu0 0.0
  %1756 = vmatprep.subr.mxu0 0.0
  %1757 = vmatpush1.msra.mxu0 0.0
  %1758 = vmatprep.subr.mxu0 0.0
  %1759 = vmatpush1.msra.mxu0 0.0
  %1760 = vmatprep.subr.mxu0 0.0
  %1761 = vmatpush1.msra.mxu0 0.0
  %1762 = vmatprep.subr.mxu0 0.0
  %1763 = vmatpush1.msra.mxu0 0.0
  %1764 = vmatprep.subr.mxu0 0.0
  %1765 = vmatpush1.msra.mxu0 0.0
  %1766 = vmatprep.subr.mxu0 0.0
  %1767 = vmatpush1.msra.mxu0 0.0
  %1768 = vmatprep.subr.mxu0 0.0
  %1769 = vmatpush1.msra.mxu0 0.0
  %1770 = vmatprep.subr.mxu0 0.0
  %1771 = vmatpush1.msra.mxu0 0.0
  %1772 = vmatprep.subr.mxu0 0.0
  %1773 = vmatpush1.msra.mxu0 0.0
  %1774 = vmatprep.subr.mxu0 0.0
  %1775 = vmatpush1.msra.mxu0 0.0
  %1776 = vmatprep.subr.mxu0 0.0
  %1777 = vmatpush1.msra.mxu0 0.0
  %1778 = vmatprep.subr.mxu0 0.0
  %1779 = vmatpush1.msra.mxu0 0.0
  %1780 = vmatprep.subr.mxu0 0.0
  %1781 = vmatpush1.msra.mxu0 0.0
  %1782 = vmatprep.subr.mxu0 0.0
  %1783 = vmatpush1.msra.mxu0 0.0
  %1784 = vmatprep.subr.mxu0 0.0
  %1785 = vmatpush1.msra.mxu0 0.0
  %1786 = vmatprep.subr.mxu0 0.0
  %1787 = vmatpush1.msra.mxu0 0.0
  %1788 = vmatprep.subr.mxu0 0.0
  %1789 = vmatpush1.msra.mxu0 0.0
  %1790 = vmatprep.subr.mxu0 0.0
  %1791 = vmatpush1.msra.mxu0 0.0
  %1792 = vmatprep.subr.mxu0 0.0
  %1793 = vmatpush1.msra.mxu0 0.0
  %1794 = vmatprep.mubr.f32.mxu0 0.0
  %1795 = vmatmul.mubr.f32.gmra.mrb[0].mxu0 %v1728
  %v1796 = vpop.f32.mrb[0].mxu0
  %v1797 = vadd.f32 %v199, %v1796
  %v1798 = vpop.f32.mrb[0].mxu0
  %1799 = vdwg.mxu0
  %v1800 = vxor.u32 %v1797, 2147483648
  %v1801 = vmul.f32 %v1800, 1.442695
  %v1802 = vpow.pop %v1801
  %v1803 = vadd.f32 %v1802, 1.0
  %v1804 = vrcp.pop %v1803
  %v1805 = vmul.f32 1.0, %v1804
  %v1806 = vtanh.pop %v1797
  %v1807 = vmul.f32 %v1805, %v1614
  %1809 = vrot.lane.b32.xlu0 %v1806, 32
  %v1810 = vpop.permute.xlu0 %1809
  %v1812 = vmul.f32 %v1805, %v1810
  %1814 = vrot.lane.b32.xlu0 %v1812, 32
  %v1815 = vpop.permute.xlu0 %1814
  %v1817 = vadd.f32 %v1807, %v1815
  %v1818 = vtanh.pop %v1817
  %1820 = vrot.lane.b32.xlu0 %v1818, 32
  %v1821 = vpop.permute.xlu0 %1820
  %v1823 = vmul.f32 %v1805, %v1821
  %v1824 = vld [vmem:[%s6] sm:$0xff]
  %v1825 = vld [vmem:[%s6 + $0x8] sm:$0xff]
  %v1826 = vld [vmem:[%s6 + $0x10] sm:$0xff]
  %v1827 = vld [vmem:[%s6 + $0x18] sm:$0xff]
  %v1828 = vld [vmem:[%s7] sm:$0x1]
  %v1830 = vlaneseq
  %v1831 = vshrl.u32 %v1830, 7
  %v1832 = vsub.s32 0, %v1831
  %v1833 = vrot.slane %v1828, %v1832
  %1836 = vrot.lane.b32.xlu0 %v1823, 64
  %v1837 = vpop.permute.xlu0 %1836
  %v1838 = vsel %vm201, %v1837, 0
  %1840 = vmatprep.subr.mxu0 0.0
  %1841 = vmatpush1.msra.mxu0 %v1824
  %1842 = vmatprep.subr.mxu0 0.0
  %1843 = vmatpush1.msra.mxu0 %v1825
  %1844 = vmatprep.subr.mxu0 0.0
  %1845 = vmatpush1.msra.mxu0 %v1826
  %1846 = vmatprep.subr.mxu0 0.0
  %1847 = vmatpush1.msra.mxu0 %v1827
  %1848 = vmatprep.subr.mxu0 0.0
  %1849 = vmatpush1.msra.mxu0 0.0
  %1850 = vmatprep.subr.mxu0 0.0
  %1851 = vmatpush1.msra.mxu0 0.0
  %1852 = vmatprep.subr.mxu0 0.0
  %1853 = vmatpush1.msra.mxu0 0.0
  %1854 = vmatprep.subr.mxu0 0.0
  %1855 = vmatpush1.msra.mxu0 0.0
  %1856 = vmatprep.subr.mxu0 0.0
  %1857 = vmatpush1.msra.mxu0 0.0
  %1858 = vmatprep.subr.mxu0 0.0
  %1859 = vmatpush1.msra.mxu0 0.0
  %1860 = vmatprep.subr.mxu0 0.0
  %1861 = vmatpush1.msra.mxu0 0.0
  %1862 = vmatprep.subr.mxu0 0.0
  %1863 = vmatpush1.msra.mxu0 0.0
  %1864 = vmatprep.subr.mxu0 0.0
  %1865 = vmatpush1.msra.mxu0 0.0
  %1866 = vmatprep.subr.mxu0 0.0
  %1867 = vmatpush1.msra.mxu0 0.0
  %1868 = vmatprep.subr.mxu0 0.0
  %1869 = vmatpush1.msra.mxu0 0.0
  %1870 = vmatprep.subr.mxu0 0.0
  %1871 = vmatpush1.msra.mxu0 0.0
  %1872 = vmatprep.subr.mxu0 0.0
  %1873 = vmatpush1.msra.mxu0 0.0
  %1874 = vmatprep.subr.mxu0 0.0
  %1875 = vmatpush1.msra.mxu0 0.0
  %1876 = vmatprep.subr.mxu0 0.0
  %1877 = vmatpush1.msra.mxu0 0.0
  %1878 = vmatprep.subr.mxu0 0.0
  %1879 = vmatpush1.msra.mxu0 0.0
  %1880 = vmatprep.subr.mxu0 0.0
  %1881 = vmatpush1.msra.mxu0 0.0
  %1882 = vmatprep.subr.mxu0 0.0
  %1883 = vmatpush1.msra.mxu0 0.0
  %1884 = vmatprep.subr.mxu0 0.0
  %1885 = vmatpush1.msra.mxu0 0.0
  %1886 = vmatprep.subr.mxu0 0.0
  %1887 = vmatpush1.msra.mxu0 0.0
  %1888 = vmatprep.subr.mxu0 0.0
  %1889 = vmatpush1.msra.mxu0 0.0
  %1890 = vmatprep.subr.mxu0 0.0
  %1891 = vmatpush1.msra.mxu0 0.0
  %1892 = vmatprep.subr.mxu0 0.0
  %1893 = vmatpush1.msra.mxu0 0.0
  %1894 = vmatprep.subr.mxu0 0.0
  %1895 = vmatpush1.msra.mxu0 0.0
  %1896 = vmatprep.subr.mxu0 0.0
  %1897 = vmatpush1.msra.mxu0 0.0
  %1898 = vmatprep.subr.mxu0 0.0
  %1899 = vmatpush1.msra.mxu0 0.0
  %1900 = vmatprep.subr.mxu0 0.0
  %1901 = vmatpush1.msra.mxu0 0.0
  %1902 = vmatprep.subr.mxu0 0.0
  %1903 = vmatpush1.msra.mxu0 0.0
  %1904 = vmatprep.mubr.f32.mxu0 0.0
  %1905 = vmatmul.mubr.f32.gmra.mrb[0].mxu0 %v1838
  %v1906 = vpop.f32.mrb[0].mxu0
  %v1907 = vadd.f32 %v1833, %v1906
  %v1908 = vpop.f32.mrb[0].mxu0
  %1909 = vdwg.mxu0
  %v1910 = vmax.f32 %v1907, 0.0
  %v1911 = vld [vmem:[%s8] sm:$0xff]
  %v1912 = vld [vmem:[%s8 + $0x8] sm:$0xff]
  %v1913 = vld [vmem:[%s8 + $0x10] sm:$0xff]
  %v1914 = vld [vmem:[%s8 + $0x18] sm:$0xff]
  %v1915 = vld [vmem:[%s8 + $0x20] sm:$0xff]
  %v1916 = vld [vmem:[%s8 + $0x28] sm:$0xff]
  %v1917 = vld [vmem:[%s8 + $0x30] sm:$0xff]
  %v1918 = vld [vmem:[%s8 + $0x38] sm:$0xff]
  %v1919 = vld [vmem:[%s8 + $0x40] sm:$0xff]
  %v1920 = vld [vmem:[%s8 + $0x48] sm:$0xff]
  %v1921 = vld [vmem:[%s8 + $0x50] sm:$0xff]
  %v1922 = vld [vmem:[%s8 + $0x58] sm:$0xff]
  %v1923 = vld [vmem:[%s8 + $0x60] sm:$0xff]
  %v1924 = vld [vmem:[%s8 + $0x68] sm:$0xff]
  %v1925 = vld [vmem:[%s8 + $0x70] sm:$0xff]
  %v1926 = vld [vmem:[%s8 + $0x78] sm:$0xff]
  %v1927 = vld [vmem:[%s9] sm:$0x1]
  %v1929 = vlaneseq
  %v1930 = vshrl.u32 %v1929, 7
  %v1931 = vsub.s32 0, %v1930
  %v1932 = vrot.slane %v1927, %v1931
  %1934 = vmatprep.subr.mxu0 0.0
  %1935 = vmatpush1.msra.mxu0 %v1911
  %1936 = vmatprep.subr.mxu0 0.0
  %1937 = vmatpush1.msra.mxu0 %v1912
  %1938 = vmatprep.subr.mxu0 0.0
  %1939 = vmatpush1.msra.mxu0 %v1913
  %1940 = vmatprep.subr.mxu0 0.0
  %1941 = vmatpush1.msra.mxu0 %v1914
  %1942 = vmatprep.subr.mxu0 0.0
  %1943 = vmatpush1.msra.mxu0 %v1915
  %1944 = vmatprep.subr.mxu0 0.0
  %1945 = vmatpush1.msra.mxu0 %v1916
  %1946 = vmatprep.subr.mxu0 0.0
  %1947 = vmatpush1.msra.mxu0 %v1917
  %1948 = vmatprep.subr.mxu0 0.0
  %1949 = vmatpush1.msra.mxu0 %v1918
  %1950 = vmatprep.subr.mxu0 0.0
  %1951 = vmatpush1.msra.mxu0 %v1919
  %1952 = vmatprep.subr.mxu0 0.0
  %1953 = vmatpush1.msra.mxu0 %v1920
  %1954 = vmatprep.subr.mxu0 0.0
  %1955 = vmatpush1.msra.mxu0 %v1921
  %1956 = vmatprep.subr.mxu0 0.0
  %1957 = vmatpush1.msra.mxu0 %v1922
  %1958 = vmatprep.subr.mxu0 0.0
  %1959 = vmatpush1.msra.mxu0 %v1923
  %1960 = vmatprep.subr.mxu0 0.0
  %1961 = vmatpush1.msra.mxu0 %v1924
  %1962 = vmatprep.subr.mxu0 0.0
  %1963 = vmatpush1.msra.mxu0 %v1925
  %1964 = vmatprep.subr.mxu0 0.0
  %1965 = vmatpush1.msra.mxu0 %v1926
  %1966 = vmatprep.subr.mxu0 0.0
  %1967 = vmatpush1.msra.mxu0 0.0
  %1968 = vmatprep.subr.mxu0 0.0
  %1969 = vmatpush1.msra.mxu0 0.0
  %1970 = vmatprep.subr.mxu0 0.0
  %1971 = vmatpush1.msra.mxu0 0.0
  %1972 = vmatprep.subr.mxu0 0.0
  %1973 = vmatpush1.msra.mxu0 0.0
  %1974 = vmatprep.subr.mxu0 0.0
  %1975 = vmatpush1.msra.mxu0 0.0
  %1976 = vmatprep.subr.mxu0 0.0
  %1977 = vmatpush1.msra.mxu0 0.0
  %1978 = vmatprep.subr.mxu0 0.0
  %1979 = vmatpush1.msra.mxu0 0.0
  %1980 = vmatprep.subr.mxu0 0.0
  %1981 = vmatpush1.msra.mxu0 0.0
  %1982 = vmatprep.subr.mxu0 0.0
  %1983 = vmatpush1.msra.mxu0 0.0
  %1984 = vmatprep.subr.mxu0 0.0
  %1985 = vmatpush1.msra.mxu0 0.0
  %1986 = vmatprep.subr.mxu0 0.0
  %1987 = vmatpush1.msra.mxu0 0.0
  %1988 = vmatprep.subr.mxu0 0.0
  %1989 = vmatpush1.msra.mxu0 0.0
  %1990 = vmatprep.subr.mxu0 0.0
  %1991 = vmatpush1.msra.mxu0 0.0
  %1992 = vmatprep.subr.mxu0 0.0
  %1993 = vmatpush1.msra.mxu0 0.0
  %1994 = vmatprep.subr.mxu0 0.0
  %1995 = vmatpush1.msra.mxu0 0.0
  %1996 = vmatprep.subr.mxu0 0.0
  %1997 = vmatpush1.msra.mxu0 0.0
  %1998 = vmatprep.mubr.f32.mxu0 0.0
  %1999 = vmatmul.mubr.f32.gmra.mrb[0].mxu0 %v1910
  %v2000 = vpop.f32.mrb[0].mxu0
  %v2001 = vadd.f32 %v1932, %v2000
  %v2002 = vpop.f32.mrb[0].mxu0
  %2003 = vdwg.mxu0
  %2004 = vst [vmem:[%s10] sm:$0xff] %v2001
  // Predicated region
  $region42: #{lstm_model_forward.1} parent=0 // pred_check
    _
  $region43: #{lstm_model_forward.1} parent=0 // pred_check_branch
    %2006 = sbr.rel (0) target = $region45
  $region44: #{lstm_model_forward.1} parent=0 // pred_region
    _
  $region45: #{lstm_model_forward.1} parent=0 // pred_fallthru
    _
  // Predicated region
  $region46: #{lstm_model_forward.1} parent=0 // pred_check
    _
  $region47: #{lstm_model_forward.1} parent=0 // pred_check_branch
    %2008 = sbr.rel (0) target = $region49
  $region48: #{lstm_model_forward.1} parent=0 // pred_region
    _
  $region49: #{lstm_model_forward.1} parent=0 // pred_fallthru
    _

</llo_original>
